<compile_context>
chip_gen: v5e
topology: v5e:2x2
jax: 0.10.0
libtpu: 0.0.40
codegen_flags: <defaults>
</compile_context>

<pallas_src>
import jax
import jax.numpy as jnp
from jax import lax
from jax.experimental import pallas as pl
from jax.experimental.pallas import tpu as pltpu

IN_CHANNELS = 16
OUT_CHANNELS = 1
W = 128
FIRST_OMEGA = 30.0      # args.density_map_first_omega (SIREN default)
HIDDEN_OMEGA = 1.0

_TWO_PI = 6.283185307179586
_INV_TWO_PI = 0.15915494309189535
_PI = 3.141592653589793
_HALF_PI = 1.5707963267948966


def _sin_bounded(x):
    """Bounded-range sine: cheap mod-2pi reduction (no Payne-Hanek / inf / NaN
    handling) + fold to [-pi/2, pi/2] + odd degree-9 polynomial.
    Max abs error ~3.6e-6.  Valid here because SIREN pre-activations are O(30);
    accuracy degrades gracefully (no fault) for wild inputs."""
    k = jnp.floor(x * _INV_TWO_PI + 0.5)
    r = x - _TWO_PI * k                                   # -> [-pi, pi]
    fold = jnp.abs(r) > _HALF_PI                          # sin(r) = sin(+-pi - r)
    r = jnp.where(fold, jnp.where(r >= 0.0, _PI, -_PI) - r, r)
    x2 = r * r
    p = 2.7557319223985893e-06                            #  1/9!
    p = p * x2 - 1.9841269841269841e-04                   # -1/7!
    p = p * x2 + 8.3333333333333332e-03                   #  1/5!
    p = p * x2 - 0.16666666666666666                      # -1/3!
    return r + r * x2 * p


def _density_kernel(x_ref, w1_ref, b1_ref, w2_ref, b2_ref, w3_ref, b3_ref, o_ref):
    # x_ref: [tile_n, C_in] f32 block of the untransposed feature matrix.
    # Layer 1 contracts the channel axis of BOTH operands (NT matmul) so points
    # land on the lane axis ([W, tile_n]) for the rest of the network and the
    # lane-dense output; the tiny RHS "transpose" this implies rides the idle XLU.
    z1 = lax.dot_general(w1_ref[...], x_ref[...],
                         dimension_numbers=(((1,), (1,)), ((), ())),
                         preferred_element_type=jnp.float32) + b1_ref[...]
    h = _sin_bounded(z1)

    # Layer 2: hidden omega already folded (== 1.0).  bf16 MXU matmul with f32
    # accumulation; bias add + sine stay in f32.
    z2 = jnp.dot(w2_ref[...], h.astype(jnp.bfloat16),
                 preferred_element_type=jnp.float32) + b2_ref[...]
    h = _sin_bounded(z2)

    # Final linear (kept on the MXU) + ReLU.  Result is lane-dense [1, tile_n].
    y = jnp.dot(w3_ref[...], h.astype(jnp.bfloat16),
                preferred_element_type=jnp.float32) + b3_ref[0]
    # TODO(synk): replace ReLU if lagrangian_density_activation differs.
    o_ref[...] = jnp.maximum(y, 0.0).astype(o_ref.dtype)


def _round_up(x, m):
    return ((x + m - 1) // m) * m


def density_mapping(feature, params, *, tile_n=2048,
                    first_omega=FIRST_OMEGA, hidden_omega=HIDDEN_OMEGA):
    """feature: [N, IN_CHANNELS] float32 -> density [N, OUT_CHANNELS] float32."""
    w1, b1, w2, b2, w3, b3 = params
    n, c_in = feature.shape
    assert c_in == IN_CHANNELS
    assert tile_n >= 128

    # ---- parameter prep (tiny, outside the kernel): fold omegas, transpose to
    # [out, in], cast hidden-layer weights to bf16 (layer 1 stays f32). ----
    w1s = (first_omega * w1).T.astype(jnp.float32)               # [W, C_in]
    b1s = (first_omega * b1).reshape(W, 1).astype(jnp.float32)   # [W, 1]
    w2s = (hidden_omega * w2).T.astype(jnp.bfloat16)             # [W, W]
    b2s = (hidden_omega * b2).reshape(W, 1).astype(jnp.float32)  # [W, 1]
    w3t = w3.T.astype(jnp.bfloat16)                              # [1, W]
    b3s = b3.reshape(OUT_CHANNELS).astype(jnp.float32)           # scalar (SMEM)

    # ---- tiling: read feature blocks directly (no transpose / pad pass).
    # Make the grid even (>= 2 steps) when N allows so v7x's two TensorCores
    # split the parallel axis evenly; otherwise one big tile. ----
    tile_n = _round_up(min(tile_n, _round_up(n, 128)), 128)
    if n >= 2 * 128:
        n_blocks = max(2, pl.cdiv(n, tile_n))
        n_blocks += n_blocks % 2                                  # even step count
        tile_n = max(128, _round_up(pl.cdiv(n, n_blocks), 128))
    grid = (pl.cdiv(n, tile_n),)

    full = lambda i: (0, 0)   # weights/biases resident across the whole grid

    out = pl.pallas_call(
        _density_kernel,
        out_shape=jax.ShapeDtypeStruct((1, n), jnp.float32),
        grid_spec=pltpu.PrefetchScalarGridSpec(
            num_scalar_prefetch=0,
            grid=grid,
            in_specs=[
                pl.BlockSpec((tile_n, IN_CHANNELS), lambda i: (i, 0)),  # x tile
                pl.BlockSpec((W, IN_CHANNELS), full),                   # W1 (omega folded)
                pl.BlockSpec((W, 1), full),                             # b1
                pl.BlockSpec((W, W), full),                             # W2 (bf16)
                pl.BlockSpec((W, 1), full),                             # b2
                pl.BlockSpec((OUT_CHANNELS, W), full),                  # W3 (bf16)
                pl.BlockSpec(memory_space=pltpu.MemorySpace.SMEM),      # b3 scalar
            ],
            out_specs=pl.BlockSpec((1, tile_n), lambda i: (0, i)),      # lane-dense
        ),
        compiler_params=pltpu.CompilerParams(
            dimension_semantics=("parallel",),
            vmem_limit_bytes=32 * 1024 * 1024),
    )(feature.astype(jnp.float32), w1s, b1s, w2s, b2s, w3t, b3s)

    return out[0].reshape(n, OUT_CHANNELS)


def init_params(key):
    """Deterministic SIREN-style init, weights stored as [fan_in, fan_out]."""
    k1, k2, k3, kb1, kb2, kb3 = jax.random.split(key, 6)

    # SineLayer(in_channels, W, omega_0=FIRST_OMEGA): first-layer init U(-1/in, 1/in)
    lim1 = 1.0 / IN_CHANNELS
    w1 = jax.random.uniform(k1, (IN_CHANNELS, W), jnp.float32, -lim1, lim1)
    b1 = jax.random.uniform(kb1, (1, W), jnp.float32, -lim1, lim1)

    # SineLayer(W, W, omega_0=1.0): hidden init U(-sqrt(6/in)/omega, sqrt(6/in)/omega)
    lim2 = jnp.sqrt(6.0 / W) / HIDDEN_OMEGA
    w2 = jax.random.uniform(k2, (W, W), jnp.float32, -lim2, lim2)
    b2 = jax.random.uniform(kb2, (1, W), jnp.float32, -lim2, lim2)

    # nn.Linear(W, out_channels): default U(-1/sqrt(in), 1/sqrt(in))
    lim3 = 1.0 / jnp.sqrt(W * 1.0)
    w3 = jax.random.uniform(k3, (W, OUT_CHANNELS), jnp.float32, -lim3, lim3)
    b3 = jax.random.uniform(kb3, (1, OUT_CHANNELS), jnp.float32, -lim3, lim3)

    return (w1, b1, w2, b2, w3, b3)


def density_mapping_ref_f32(feature, params):
    """Pure-f32 reference of the original module forward (true jnp.sin)."""
    w1, b1, w2, b2, w3, b3 = params
    h = jnp.sin(FIRST_OMEGA * (feature @ w1 + b1))
    h = jnp.sin(HIDDEN_OMEGA * (h @ w2 + b2))
    y = h @ w3 + b3
    return jnp.maximum(y, 0.0)


def density_mapping_ref_mixed(feature, params):
    """Reference mirroring the kernel's numerics (bounded-range sine, f32
    layer 1, bf16 hidden matmuls with f32 accumulation)."""
    w1, b1, w2, b2, w3, b3 = params
    h = _sin_bounded(feature @ (FIRST_OMEGA * w1) + FIRST_OMEGA * b1)
    h = _sin_bounded(jnp.dot(h.astype(jnp.bfloat16),
                             (HIDDEN_OMEGA * w2).astype(jnp.bfloat16),
                             preferred_element_type=jnp.float32) + HIDDEN_OMEGA * b2)
    y = jnp.dot(h.astype(jnp.bfloat16), w3.astype(jnp.bfloat16),
                preferred_element_type=jnp.float32) + b3
    return jnp.maximum(y, 0.0)


if __name__ == "__main__":
    key = jax.random.PRNGKey(0)
    pkey, xkey = jax.random.split(key)

    params = init_params(pkey)
    # Small batch of Lagrangian particle features: [N, in_channels].
    # N=384 exercises the multi-step parallel grid AND a ragged boundary block.
    N = 384
    feature = jax.random.normal(xkey, (N, IN_CHANNELS), jnp.float32)

    density = jax.block_until_ready(density_mapping(feature, params))
    assert density.shape == (N, OUT_CHANNELS)

    # Tight check vs a reference mirroring the kernel's numerics
    # (bounded-range sine + bf16 hidden matmuls).
    ref_mixed = density_mapping_ref_mixed(feature, params)
    assert jnp.allclose(density, ref_mixed, atol=2e-3, rtol=2e-3), (
        float(jnp.max(jnp.abs(density - ref_mixed))))

    # Sanity check vs the pure-f32 module forward with true sin (bf16 hidden
    # matmuls dominate the ~1e-2 absolute error; poly-sin adds ~4e-6).
    ref_f32 = density_mapping_ref_f32(feature, params)
    assert jnp.allclose(density, ref_f32, atol=5e-2, rtol=5e-2), (
        float(jnp.max(jnp.abs(density - ref_f32))))

    print("KERNEL_OK")
</pallas_src>

<mosaic_0001>
module attributes {stable_mosaic.version = 11 : i64} {
  func.func @_density_kernel(%arg0: i32, %arg1: memref<256x16xf32, #tpu.memory_space<vmem>>, %arg2: memref<128x16xf32, #tpu.memory_space<vmem>>, %arg3: memref<128x1xf32, #tpu.memory_space<vmem>>, %arg4: memref<128x128xbf16, #tpu.memory_space<vmem>>, %arg5: memref<128x1xf32, #tpu.memory_space<vmem>>, %arg6: memref<1x128xbf16, #tpu.memory_space<vmem>>, %arg7: memref<1xf32, #tpu.memory_space<smem>>, %arg8: memref<1x256xf32, #tpu.memory_space<vmem>>) attributes {dimension_semantics = [#tpu.dimension_semantics<parallel>], iteration_bounds = array<i64: 2>, scalar_prefetch = 0 : i64, scratch_operands = 0 : i64, tpu.core_type = #tpu.core_type<tc>, window_params = [{transform_indices = @transform_0, window_bounds = array<i64: 256, 16>}, {pipeline_mode = #tpu.pipeline_mode<synchronous>, transform_indices = @transform_1, window_bounds = array<i64: 128, 16>}, {pipeline_mode = #tpu.pipeline_mode<synchronous>, transform_indices = @transform_2, window_bounds = array<i64: 128, 1>}, {pipeline_mode = #tpu.pipeline_mode<synchronous>, transform_indices = @transform_3, window_bounds = array<i64: 128, 128>}, {pipeline_mode = #tpu.pipeline_mode<synchronous>, transform_indices = @transform_4, window_bounds = array<i64: 128, 1>}, {pipeline_mode = #tpu.pipeline_mode<synchronous>, transform_indices = @transform_5, window_bounds = array<i64: 1, 128>}, {transform_indices = @transform_6, window_bounds = array<i64: 1>}, {transform_indices = @transform_7, window_bounds = array<i64: 1, 256>}]} {
    %c0 = arith.constant 0 : index
    %c0_0 = arith.constant 0 : index
    %0 = vector.load %arg2[%c0, %c0_0] : memref<128x16xf32, #tpu.memory_space<vmem>>, vector<128x16xf32>
    %c0_1 = arith.constant 0 : index
    %c0_2 = arith.constant 0 : index
    %1 = vector.load %arg1[%c0_1, %c0_2] : memref<256x16xf32, #tpu.memory_space<vmem>>, vector<256x16xf32>
    %cst = arith.constant dense<0.000000e+00> : vector<128x256xf32>
    %2 = tpu.matmul %0, %1, %cst {dimension_numbers = #tpu.dot_dimension_numbers<[1], [1], [0], [0], [0, 0, 1, 0], [], []>} : vector<128x16xf32>, vector<256x16xf32>, vector<128x256xf32> -> vector<128x256xf32>
    %c0_3 = arith.constant 0 : index
    %c0_4 = arith.constant 0 : index
    %3 = vector.load %arg3[%c0_3, %c0_4] : memref<128x1xf32, #tpu.memory_space<vmem>>, vector<128x1xf32>
    %4 = vector.broadcast %3 : vector<128x1xf32> to vector<128x256xf32>
    %5 = arith.addf %2, %4 : vector<128x256xf32>
    %cst_5 = arith.constant 0.159154937 : f32
    %6 = vector.broadcast %cst_5 : f32 to vector<128x256xf32>
    %7 = arith.mulf %5, %6 : vector<128x256xf32>
    %cst_6 = arith.constant 5.000000e-01 : f32
    %8 = vector.broadcast %cst_6 : f32 to vector<128x256xf32>
    %9 = arith.addf %7, %8 : vector<128x256xf32>
    %10 = math.floor %9 : vector<128x256xf32>
    %cst_7 = arith.constant 6.28318548 : f32
    %11 = vector.broadcast %cst_7 : f32 to vector<128x256xf32>
    %12 = arith.mulf %11, %10 : vector<128x256xf32>
    %13 = arith.subf %5, %12 : vector<128x256xf32>
    %14 = math.absf %13 : vector<128x256xf32>
    %cst_8 = arith.constant 1.57079637 : f32
    %15 = vector.broadcast %cst_8 : f32 to vector<128x256xf32>
    %16 = arith.cmpf ogt, %14, %15 : vector<128x256xf32>
    %cst_9 = arith.constant 0.000000e+00 : f32
    %17 = vector.broadcast %cst_9 : f32 to vector<128x256xf32>
    %18 = arith.cmpf oge, %13, %17 : vector<128x256xf32>
    %cst_10 = arith.constant 3.14159274 : f32
    %cst_11 = arith.constant -3.14159274 : f32
    %19 = vector.broadcast %cst_10 : f32 to vector<128x256xf32>
    %20 = vector.broadcast %cst_11 : f32 to vector<128x256xf32>
    %21 = arith.select %18, %19, %20 : vector<128x256xi1>, vector<128x256xf32>
    %22 = arith.subf %21, %13 : vector<128x256xf32>
    %23 = arith.select %16, %22, %13 : vector<128x256xi1>, vector<128x256xf32>
    %24 = arith.mulf %23, %23 : vector<128x256xf32>
    %cst_12 = arith.constant 2.75573188E-6 : f32
    %25 = vector.broadcast %cst_12 : f32 to vector<128x256xf32>
    %26 = arith.mulf %25, %24 : vector<128x256xf32>
    %cst_13 = arith.constant 1.98412701E-4 : f32
    %27 = vector.broadcast %cst_13 : f32 to vector<128x256xf32>
    %28 = arith.subf %26, %27 : vector<128x256xf32>
    %29 = arith.mulf %28, %24 : vector<128x256xf32>
    %cst_14 = arith.constant 0.00833333377 : f32
    %30 = vector.broadcast %cst_14 : f32 to vector<128x256xf32>
    %31 = arith.addf %29, %30 : vector<128x256xf32>
    %32 = arith.mulf %31, %24 : vector<128x256xf32>
    %cst_15 = arith.constant 0.166666672 : f32
    %33 = vector.broadcast %cst_15 : f32 to vector<128x256xf32>
    %34 = arith.subf %32, %33 : vector<128x256xf32>
    %35 = arith.mulf %23, %24 : vector<128x256xf32>
    %36 = arith.mulf %35, %34 : vector<128x256xf32>
    %37 = arith.addf %23, %36 : vector<128x256xf32>
    %c0_16 = arith.constant 0 : index
    %c0_17 = arith.constant 0 : index
    %38 = vector.load %arg4[%c0_16, %c0_17] : memref<128x128xbf16, #tpu.memory_space<vmem>>, vector<128x128xbf16>
    %39 = arith.truncf %37 : vector<128x256xf32> to vector<128x256xbf16>
    %cst_18 = arith.constant dense<0.000000e+00> : vector<128x256xf32>
    %40 = tpu.matmul %38, %39, %cst_18 {dimension_numbers = #tpu.dot_dimension_numbers<[1], [0], [0], [1], [0, 0, 1, 1], [], []>} : vector<128x128xbf16>, vector<128x256xbf16>, vector<128x256xf32> -> vector<128x256xf32>
    %c0_19 = arith.constant 0 : index
    %c0_20 = arith.constant 0 : index
    %41 = vector.load %arg5[%c0_19, %c0_20] : memref<128x1xf32, #tpu.memory_space<vmem>>, vector<128x1xf32>
    %42 = vector.broadcast %41 : vector<128x1xf32> to vector<128x256xf32>
    %43 = arith.addf %40, %42 : vector<128x256xf32>
    %cst_21 = arith.constant 0.159154937 : f32
    %44 = vector.broadcast %cst_21 : f32 to vector<128x256xf32>
    %45 = arith.mulf %43, %44 : vector<128x256xf32>
    %cst_22 = arith.constant 5.000000e-01 : f32
    %46 = vector.broadcast %cst_22 : f32 to vector<128x256xf32>
    %47 = arith.addf %45, %46 : vector<128x256xf32>
    %48 = math.floor %47 : vector<128x256xf32>
    %cst_23 = arith.constant 6.28318548 : f32
    %49 = vector.broadcast %cst_23 : f32 to vector<128x256xf32>
    %50 = arith.mulf %49, %48 : vector<128x256xf32>
    %51 = arith.subf %43, %50 : vector<128x256xf32>
    %52 = math.absf %51 : vector<128x256xf32>
    %cst_24 = arith.constant 1.57079637 : f32
    %53 = vector.broadcast %cst_24 : f32 to vector<128x256xf32>
    %54 = arith.cmpf ogt, %52, %53 : vector<128x256xf32>
    %cst_25 = arith.constant 0.000000e+00 : f32
    %55 = vector.broadcast %cst_25 : f32 to vector<128x256xf32>
    %56 = arith.cmpf oge, %51, %55 : vector<128x256xf32>
    %cst_26 = arith.constant 3.14159274 : f32
    %cst_27 = arith.constant -3.14159274 : f32
    %57 = vector.broadcast %cst_26 : f32 to vector<128x256xf32>
    %58 = vector.broadcast %cst_27 : f32 to vector<128x256xf32>
    %59 = arith.select %56, %57, %58 : vector<128x256xi1>, vector<128x256xf32>
    %60 = arith.subf %59, %51 : vector<128x256xf32>
    %61 = arith.select %54, %60, %51 : vector<128x256xi1>, vector<128x256xf32>
    %62 = arith.mulf %61, %61 : vector<128x256xf32>
    %cst_28 = arith.constant 2.75573188E-6 : f32
    %63 = vector.broadcast %cst_28 : f32 to vector<128x256xf32>
    %64 = arith.mulf %63, %62 : vector<128x256xf32>
    %cst_29 = arith.constant 1.98412701E-4 : f32
    %65 = vector.broadcast %cst_29 : f32 to vector<128x256xf32>
    %66 = arith.subf %64, %65 : vector<128x256xf32>
    %67 = arith.mulf %66, %62 : vector<128x256xf32>
    %cst_30 = arith.constant 0.00833333377 : f32
    %68 = vector.broadcast %cst_30 : f32 to vector<128x256xf32>
    %69 = arith.addf %67, %68 : vector<128x256xf32>
    %70 = arith.mulf %69, %62 : vector<128x256xf32>
    %cst_31 = arith.constant 0.166666672 : f32
    %71 = vector.broadcast %cst_31 : f32 to vector<128x256xf32>
    %72 = arith.subf %70, %71 : vector<128x256xf32>
    %73 = arith.mulf %61, %62 : vector<128x256xf32>
    %74 = arith.mulf %73, %72 : vector<128x256xf32>
    %75 = arith.addf %61, %74 : vector<128x256xf32>
    %c0_32 = arith.constant 0 : index
    %c0_33 = arith.constant 0 : index
    %76 = vector.load %arg6[%c0_32, %c0_33] : memref<1x128xbf16, #tpu.memory_space<vmem>>, vector<1x128xbf16>
    %77 = arith.truncf %75 : vector<128x256xf32> to vector<128x256xbf16>
    %cst_34 = arith.constant dense<0.000000e+00> : vector<1x256xf32>
    %78 = tpu.matmul %76, %77, %cst_34 {dimension_numbers = #tpu.dot_dimension_numbers<[1], [0], [0], [1], [0, 0, 1, 1], [], []>} : vector<1x128xbf16>, vector<128x256xbf16>, vector<1x256xf32> -> vector<1x256xf32>
    %c0_35 = arith.constant 0 : index
    %79 = memref.load %arg7[%c0_35] : memref<1xf32, #tpu.memory_space<smem>>
    %80 = vector.broadcast %79 : f32 to vector<1x256xf32>
    %81 = arith.addf %78, %80 : vector<1x256xf32>
    %cst_36 = arith.constant 0.000000e+00 : f32
    %82 = vector.broadcast %cst_36 : f32 to vector<1x256xf32>
    %83 = arith.maximumf %81, %82 : vector<1x256xf32>
    %c0_37 = arith.constant 0 : index
    %c0_38 = arith.constant 0 : index
    %84 = vector.load %arg8[%c0_37, %c0_38] : memref<1x256xf32, #tpu.memory_space<vmem>>, vector<1x256xf32>
    tpu.vector_store %arg8[%c0_37, %c0_38], %83 {strides = array<i32>} : memref<1x256xf32, #tpu.memory_space<vmem>>, vector<1x256xf32>,
    return
  }
  func.func @transform_0(%arg0: i32) -> (i32, i32) {
    %c0_i32 = arith.constant 0 : i32
    %c0_i32_0 = arith.constant 0 : i32
    return %arg0, %c0_i32 : i32, i32
  }
  func.func @transform_1(%arg0: i32) -> (i32, i32) {
    %c0_i32 = arith.constant 0 : i32
    %c0_i32_0 = arith.constant 0 : i32
    %c0_i32_1 = arith.constant 0 : i32
    return %c0_i32, %c0_i32_0 : i32, i32
  }
  func.func @transform_2(%arg0: i32) -> (i32, i32) {
    %c0_i32 = arith.constant 0 : i32
    %c0_i32_0 = arith.constant 0 : i32
    %c0_i32_1 = arith.constant 0 : i32
    return %c0_i32, %c0_i32_0 : i32, i32
  }
  func.func @transform_3(%arg0: i32) -> (i32, i32) {
    %c0_i32 = arith.constant 0 : i32
    %c0_i32_0 = arith.constant 0 : i32
    %c0_i32_1 = arith.constant 0 : i32
    return %c0_i32, %c0_i32_0 : i32, i32
  }
  func.func @transform_4(%arg0: i32) -> (i32, i32) {
    %c0_i32 = arith.constant 0 : i32
    %c0_i32_0 = arith.constant 0 : i32
    %c0_i32_1 = arith.constant 0 : i32
    return %c0_i32, %c0_i32_0 : i32, i32
  }
  func.func @transform_5(%arg0: i32) -> (i32, i32) {
    %c0_i32 = arith.constant 0 : i32
    %c0_i32_0 = arith.constant 0 : i32
    %c0_i32_1 = arith.constant 0 : i32
    return %c0_i32, %c0_i32_0 : i32, i32
  }
  func.func @transform_6(%arg0: i32) -> i32 {
    %c0_i32 = arith.constant 0 : i32
    %c0_i32_0 = arith.constant 0 : i32
    return %c0_i32 : i32
  }
  func.func @transform_7(%arg0: i32) -> (i32, i32) {
    %c0_i32 = arith.constant 0 : i32
    %c0_i32_0 = arith.constant 0 : i32
    return %c0_i32, %arg0 : i32, i32
  }
}

</mosaic_0001>

<llo_original>
// kernel: tpu_custom_call.1
$region0: #{tpu_custom_call.1}
  #allocation0 [shape = 'u32[]', space=smem, size = 0x4, offset = 0x4, fixed_abs, tag = 'smem constant byte address 0x4 - core index']
  #allocation1 [shape = 'u32[72,128]{1,0:T(1,128)}', space=vmem, size = 0x9000, scoped, tag = 'internal scratch']
  #allocation2 [shape = 'f32[1]{0:T(128)S(6)}', space=smem, size = 0x200, scoped, tag = 'scoped memory for tpu_custom_call.1']
  %s0 = inlined_call_operand.vmem [shape: f32[384,16], index: 0, kind: input, shape index: {}]
  %s1 = inlined_call_operand.vmem [shape: f32[128,16], index: 1, kind: input, shape index: {}]
  %s2 = inlined_call_operand.vmem [shape: f32[128,1], index: 2, kind: input, shape index: {}]
  %s3 = inlined_call_operand.vmem [shape: bf16[128,128], index: 3, kind: input, shape index: {}]
  %s4 = inlined_call_operand.vmem [shape: f32[128,1], index: 4, kind: input, shape index: {}]
  %s5 = inlined_call_operand.vmem [shape: bf16[1,128], index: 5, kind: input, shape index: {}]
  %s6 = inlined_call_operand.<no memory space> [shape: f32[1], index: 6, kind: input, shape index: {}]
  %s7 = inlined_call_operand.hbm [shape: f32[1,384], index: 7, kind: output, shape index: {}]
  %s8 = sld [smem:[#allocation0]]
  $region61: #{tpu_custom_call.1} parent=0
    _
  %s10 = ssub.s32 1, %s8
  %s11 = scalar_select 0, %s10, %s8
  %12 = sst [smem:[#allocation2]] %s6
  $region1: #{tpu_custom_call.1} parent=0
    #allocation3 [shape = 'u8[2048]{0}', space=vmem, size = 0x800, scoped, tag = 'output window, operand 0']
    #allocation4 [shape = 's32[2]{0}', space=sflag, size = 0x8, scoped, tag = 'scoped memory for tpu_custom_call.1']
    %13 = vsyncpa [#allocation4], 0
    %s14 = scalar_lea.sflag [#allocation4], 1
    %15 = vsyncpa %s14, 0
    loop: start=0, step=1, limit=4
    $region2: #{tpu_custom_call.1} parent=1 // loop_pre_header
      _
    $region3: #{tpu_custom_call.1} parent=1 // loop_header
      %s17 = sphi 0, %s21
      %p18 = scmp.ge.s32.totalorder %s17, 4
      %s27 = sphi 0, %s29
      %s30 = sphi 0, %s27
      %s31 = sphi 0, %s30
      %s47 = sphi 0, %s31
      %s51 = sphi 0, %s51
      %s53 = sphi 0, %s51
      %s54 = sphi 0, %s53
      %s68 = sphi 0, %s54
      %s72 = sphi 0, %s72
      %s74 = sphi 0, %s72
      %s75 = sphi 0, %s74
      %s89 = sphi 0, %s75
      %s93 = sphi 0, %s93
      %s95 = sphi 0, %s93
      %s96 = sphi 0, %s95
      %s110 = sphi 0, %s96
      %s114 = sphi 0, %s114
      %s116 = sphi 0, %s114
      %s117 = sphi 0, %s116
      %s131 = sphi 0, %s117
      %s135 = sphi 0, %s135
      %s137 = sphi 0, %s135
      %s138 = sphi 0, %s137
      %s152 = sphi 0, %s138
      %s156 = sphi 0, %s156
      %s158 = sphi 0, %s156
      %s159 = sphi 0, %s158
      %s173 = sphi 0, %s159
      %s179 = sphi 0, %s181
      %s182 = sphi 0, %s179
      %s183 = sphi 0, %s182
      %s199 = sphi 0, %s183
    $region4: #{tpu_custom_call.1} parent=1 // loop_header_branch
      %20 = sbr.rel (%p18) target = $region8
    $region5: #{tpu_custom_call.1} parent=1 // loop_body
      %s22 = ssub.s32 %s17, 1
      %s23 = ssub.s32 %s17, 2
      %s24 = sadd.s32 %s17, 1
      %s25 = ssub.s32 %s17, %s24
      %p26 = scmp.eq.s32.totalorder %s25, 0
      %s28 = sadd.s32 %s27, 1
      %s29 = scalar_select %p26, %s27, %s28
      %p32 = pneg %p26
      %p33 = scmp.eq.s32.totalorder %s17, 1
      %p34 = por %p32, %p33
      %p35 = scmp.ne.s32.totalorder %s27, %s30
      %p36 = scmp.eq.s32.totalorder %s17, 0
      %p37 = por %p35, %p36
      %p38 = scmp.ne.s32.totalorder %s27, %s30
      %p39 = scmp.eq.s32.totalorder %s22, 1
      %p40 = por %p38, %p39
      %p41 = scmp.ne.s32.totalorder %s30, %s31
      %p42 = scmp.eq.s32.totalorder %s22, 0
      %p43 = por %p41, %p42
      %p44 = scmp.ne.s32.totalorder %s30, %s31
      %p45 = scmp.eq.s32.totalorder %s23, 1
      %p46 = por %p44, %p45
      %p48 = scmp.ne.s32.totalorder %s31, %s47
      %p49 = scmp.eq.s32.totalorder %s23, 0
      %p50 = por %p48, %p49
      %s52 = sadd.s32 %s51, 1
      %p55 = scmp.eq.s32.totalorder %s17, 1
      %p56 = scmp.ne.s32.totalorder %s51, %s53
      %p57 = scmp.eq.s32.totalorder %s17, 0
      %p58 = por %p56, %p57
      %p59 = scmp.ne.s32.totalorder %s51, %s53
      %p60 = scmp.eq.s32.totalorder %s22, 1
      %p61 = por %p59, %p60
      %p62 = scmp.ne.s32.totalorder %s53, %s54
      %p63 = scmp.eq.s32.totalorder %s22, 0
      %p64 = por %p62, %p63
      %p65 = scmp.ne.s32.totalorder %s53, %s54
      %p66 = scmp.eq.s32.totalorder %s23, 1
      %p67 = por %p65, %p66
      %p69 = scmp.ne.s32.totalorder %s54, %s68
      %p70 = scmp.eq.s32.totalorder %s23, 0
      %p71 = por %p69, %p70
      %s73 = sadd.s32 %s72, 1
      %p76 = scmp.eq.s32.totalorder %s17, 1
      %p77 = scmp.ne.s32.totalorder %s72, %s74
      %p78 = scmp.eq.s32.totalorder %s17, 0
      %p79 = por %p77, %p78
      %p80 = scmp.ne.s32.totalorder %s72, %s74
      %p81 = scmp.eq.s32.totalorder %s22, 1
      %p82 = por %p80, %p81
      %p83 = scmp.ne.s32.totalorder %s74, %s75
      %p84 = scmp.eq.s32.totalorder %s22, 0
      %p85 = por %p83, %p84
      %p86 = scmp.ne.s32.totalorder %s74, %s75
      %p87 = scmp.eq.s32.totalorder %s23, 1
      %p88 = por %p86, %p87
      %p90 = scmp.ne.s32.totalorder %s75, %s89
      %p91 = scmp.eq.s32.totalorder %s23, 0
      %p92 = por %p90, %p91
      %s94 = sadd.s32 %s93, 1
      %p97 = scmp.eq.s32.totalorder %s17, 1
      %p98 = scmp.ne.s32.totalorder %s93, %s95
      %p99 = scmp.eq.s32.totalorder %s17, 0
      %p100 = por %p98, %p99
      %p101 = scmp.ne.s32.totalorder %s93, %s95
      %p102 = scmp.eq.s32.totalorder %s22, 1
      %p103 = por %p101, %p102
      %p104 = scmp.ne.s32.totalorder %s95, %s96
      %p105 = scmp.eq.s32.totalorder %s22, 0
      %p106 = por %p104, %p105
      %p107 = scmp.ne.s32.totalorder %s95, %s96
      %p108 = scmp.eq.s32.totalorder %s23, 1
      %p109 = por %p107, %p108
      %p111 = scmp.ne.s32.totalorder %s96, %s110
      %p112 = scmp.eq.s32.totalorder %s23, 0
      %p113 = por %p111, %p112
      %s115 = sadd.s32 %s114, 1
      %p118 = scmp.eq.s32.totalorder %s17, 1
      %p119 = scmp.ne.s32.totalorder %s114, %s116
      %p120 = scmp.eq.s32.totalorder %s17, 0
      %p121 = por %p119, %p120
      %p122 = scmp.ne.s32.totalorder %s114, %s116
      %p123 = scmp.eq.s32.totalorder %s22, 1
      %p124 = por %p122, %p123
      %p125 = scmp.ne.s32.totalorder %s116, %s117
      %p126 = scmp.eq.s32.totalorder %s22, 0
      %p127 = por %p125, %p126
      %p128 = scmp.ne.s32.totalorder %s116, %s117
      %p129 = scmp.eq.s32.totalorder %s23, 1
      %p130 = por %p128, %p129
      %p132 = scmp.ne.s32.totalorder %s117, %s131
      %p133 = scmp.eq.s32.totalorder %s23, 0
      %p134 = por %p132, %p133
      %s136 = sadd.s32 %s135, 1
      %p139 = scmp.eq.s32.totalorder %s17, 1
      %p140 = scmp.ne.s32.totalorder %s135, %s137
      %p141 = scmp.eq.s32.totalorder %s17, 0
      %p142 = por %p140, %p141
      %p143 = scmp.ne.s32.totalorder %s135, %s137
      %p144 = scmp.eq.s32.totalorder %s22, 1
      %p145 = por %p143, %p144
      %p146 = scmp.ne.s32.totalorder %s137, %s138
      %p147 = scmp.eq.s32.totalorder %s22, 0
      %p148 = por %p146, %p147
      %p149 = scmp.ne.s32.totalorder %s137, %s138
      %p150 = scmp.eq.s32.totalorder %s23, 1
      %p151 = por %p149, %p150
      %p153 = scmp.ne.s32.totalorder %s138, %s152
      %p154 = scmp.eq.s32.totalorder %s23, 0
      %p155 = por %p153, %p154
      %s157 = sadd.s32 %s156, 1
      %p160 = scmp.eq.s32.totalorder %s17, 1
      %p161 = scmp.ne.s32.totalorder %s156, %s158
      %p162 = scmp.eq.s32.totalorder %s17, 0
      %p163 = por %p161, %p162
      %p164 = scmp.ne.s32.totalorder %s156, %s158
      %p165 = scmp.eq.s32.totalorder %s22, 1
      %p166 = por %p164, %p165
      %p167 = scmp.ne.s32.totalorder %s158, %s159
      %p168 = scmp.eq.s32.totalorder %s22, 0
      %p169 = por %p167, %p168
      %p170 = scmp.ne.s32.totalorder %s158, %s159
      %p171 = scmp.eq.s32.totalorder %s23, 1
      %p172 = por %p170, %p171
      %p174 = scmp.ne.s32.totalorder %s159, %s173
      %p175 = scmp.eq.s32.totalorder %s23, 0
      %p176 = por %p174, %p175
      %s177 = ssub.s32 %s17, %s24
      %p178 = scmp.eq.s32.totalorder %s177, 0
      %s180 = sadd.s32 %s179, 1
      %s181 = scalar_select %p178, %s179, %s180
      %p184 = pneg %p178
      %p185 = scmp.eq.s32.totalorder %s17, 1
      %p186 = por %p184, %p185
      %p187 = scmp.ne.s32.totalorder %s179, %s182
      %p188 = scmp.eq.s32.totalorder %s17, 0
      %p189 = por %p187, %p188
      %p190 = scmp.ne.s32.totalorder %s179, %s182
      %p191 = scmp.eq.s32.totalorder %s22, 1
      %p192 = por %p190, %p191
      %p193 = scmp.ne.s32.totalorder %s182, %s183
      %p194 = scmp.eq.s32.totalorder %s22, 0
      %p195 = por %p193, %p194
      %p196 = scmp.ne.s32.totalorder %s182, %s183
      %p197 = scmp.eq.s32.totalorder %s23, 1
      %p198 = por %p196, %p197
      %p200 = scmp.ne.s32.totalorder %s183, %s199
      %p201 = scmp.eq.s32.totalorder %s23, 0
      %p202 = por %p200, %p201
      %p203 = scmp.le.s32.totalorder 1, %s17
      %p204 = scmp.lt.s32.totalorder %s17, 3
      %p205 = pnand %p203, %p204
      %p206 = pneg %p205
      // Predicated region
      $region9: #{tpu_custom_call.1} parent=5 // pred_check
        _
      $region10: #{tpu_custom_call.1} parent=5 // pred_check_branch
        %208 = sbr.rel (%p205) target = $region12
      $region11: #{tpu_custom_call.1} parent=5 // pred_region
        %s209 = ssub.s32 %s17, 1
        // Predicated region
        $region13: #{tpu_custom_call.1} parent=11 // pred_check
          %p210 = pneg %p64
        $region14: #{tpu_custom_call.1} parent=11 // pred_check_branch
          %212 = sbr.rel (%p210) target = $region16
        $region15: #{tpu_custom_call.1} parent=11 // pred_region
          _
        $region16: #{tpu_custom_call.1} parent=11 // pred_fallthru
          _
        // Predicated region
        $region17: #{tpu_custom_call.1} parent=11 // pred_check
          %p213 = pneg %p85
        $region18: #{tpu_custom_call.1} parent=11 // pred_check_branch
          %215 = sbr.rel (%p213) target = $region20
        $region19: #{tpu_custom_call.1} parent=11 // pred_region
          _
        $region20: #{tpu_custom_call.1} parent=11 // pred_fallthru
          _
        // Predicated region
        $region21: #{tpu_custom_call.1} parent=11 // pred_check
          %p216 = pneg %p106
        $region22: #{tpu_custom_call.1} parent=11 // pred_check_branch
          %218 = sbr.rel (%p216) target = $region24
        $region23: #{tpu_custom_call.1} parent=11 // pred_region
          _
        $region24: #{tpu_custom_call.1} parent=11 // pred_fallthru
          _
        // Predicated region
        $region25: #{tpu_custom_call.1} parent=11 // pred_check
          %p219 = pneg %p127
        $region26: #{tpu_custom_call.1} parent=11 // pred_check_branch
          %221 = sbr.rel (%p219) target = $region28
        $region27: #{tpu_custom_call.1} parent=11 // pred_region
          _
        $region28: #{tpu_custom_call.1} parent=11 // pred_fallthru
          _
        // Predicated region
        $region29: #{tpu_custom_call.1} parent=11 // pred_check
          %p222 = pneg %p148
        $region30: #{tpu_custom_call.1} parent=11 // pred_check_branch
          %224 = sbr.rel (%p222) target = $region32
        $region31: #{tpu_custom_call.1} parent=11 // pred_region
          _
        $region32: #{tpu_custom_call.1} parent=11 // pred_fallthru
          _
        // Predicated region
        $region33: #{tpu_custom_call.1} parent=11 // pred_check
          %p225 = pneg %p169
        $region34: #{tpu_custom_call.1} parent=11 // pred_check_branch
          %227 = sbr.rel (%p225) target = $region36
        $region35: #{tpu_custom_call.1} parent=11 // pred_region
          _
        $region36: #{tpu_custom_call.1} parent=11 // pred_fallthru
          _
      $region12: #{tpu_custom_call.1} parent=5 // pred_fallthru
        _
      %p228 = scmp.lt.s32.totalorder %s17, 2
      // Predicated region
      $region37: #{tpu_custom_call.1} parent=5 // pred_check
        %p229 = pneg %p228
      $region38: #{tpu_custom_call.1} parent=5 // pred_check_branch
        %231 = sbr.rel (%p229) target = $region40
      $region39: #{tpu_custom_call.1} parent=5 // pred_region
        // Predicated region
        $region41: #{tpu_custom_call.1} parent=39 // pred_check
          %p232 = pneg %p37
        $region42: #{tpu_custom_call.1} parent=39 // pred_check_branch
          %234 = sbr.rel (%p232) target = $region44
        $region43: #{tpu_custom_call.1} parent=39 // pred_region
          %s235 = smul.u32 32, %s17
          %s236 = ssub.s32 48, %s235
          %p237 = scmp.lt.s32.totalorder %s236, 32
          %s238 = scalar_select %p237, %s236, 32
          %s239 = smul.u32 8, %s238
          %p240 = scmp.lt.s32.totalorder %s235, 47
          %s241 = scalar_select %p240, %s235, 47
          %s242 = smul.addr %s241, 8
          %s243 = scalar_lea.vmem %s0, %s242
          %s244 = smul.u32 32, %s17
          %s245 = ssub.s32 48, %s244
          %p246 = scmp.lt.s32.totalorder %s245, 32
          %s247 = scalar_select %p246, %s245, 32
          %s248 = smul.u32 8, %s247
        $region44: #{tpu_custom_call.1} parent=39 // pred_fallthru
          _
      $region40: #{tpu_custom_call.1} parent=5 // pred_fallthru
        _
      %p249 = scmp.le.s32.totalorder 1, %s17
      %p250 = scmp.lt.s32.totalorder %s17, 3
      %p251 = pnand %p249, %p250
      %p252 = pneg %p251
      // Predicated region
      $region45: #{tpu_custom_call.1} parent=5 // pred_check
        _
      $region46: #{tpu_custom_call.1} parent=5 // pred_check_branch
        %254 = sbr.rel (%p251) target = $region48
      $region47: #{tpu_custom_call.1} parent=5 // pred_region
        %s255 = ssub.s32 %s17, 1
        %s256 = smul.u32 32, %s22
        %s257 = ssub.s32 48, %s256
        %p258 = scmp.lt.s32.totalorder %s257, 32
        %s259 = scalar_select %p258, %s257, 32
        %s260 = smul.u32 8, %s259
        %p261 = scmp.lt.s32.totalorder %s256, 47
        %s262 = scalar_select %p261, %s256, 47
        %s263 = smul.addr %s262, 8
        %s264 = scalar_lea.vmem %s0, %s263
        %p265 = pneg %p43
        %p266 = pneg %p40
        %p267 = pneg %p64
        %p268 = pneg %p61
        %p269 = pneg %p85
        %p270 = pneg %p82
        %p271 = pneg %p106
        %p272 = pneg %p103
        %p273 = pneg %p127
        %p274 = pneg %p124
        %p275 = pneg %p148
        %p276 = pneg %p145
        %p277 = pneg %p169
        %p278 = pneg %p166
        %p279 = pneg %p195
        %p280 = pneg %p192
        %s281 = sand.u32 %s182, 1
        %s282 = scalar_lea.sflag [#allocation4], %s281
        %s283 = sand.u32 %s182, 1
        %s284 = smul.addr %s283, 2
        %s285 = scalar_lea.vmem [#allocation3], %s284
        %s286 = smul.u32 32, %s22
        %s287 = ssub.s32 48, %s286
        %p288 = scmp.lt.s32.totalorder %s287, 32
        %s289 = scalar_select %p288, %s287, 32
        %s290 = smul.u32 8, %s289
        %p291 = scmp.lt.s32.totalorder %s286, 47
        %s292 = scalar_select %p291, %s286, 47
        %s293 = smul.addr %s292, 8
        %s294 = scalar_lea.vmem %s0, %s293
        %s295 = smul.u32 32, %s22
        %s296 = ssub.s32 48, %s295
        %p297 = scmp.lt.s32.totalorder %s296, 32
        %s298 = scalar_select %p297, %s296, 32
        %s299 = smul.u32 8, %s298
        %s300 = smul.u32 2, %s22
        %s301 = ssub.s32 3, %s300
        %p302 = scmp.lt.s32.totalorder %s301, 2
        %s303 = scalar_select %p302, %s301, 2
        %v304 = vld [vmem:[%s1] sm:$0xff]
        %v305 = vld [vmem:[%s1 + $0x8] sm:$0xff]
        %v306 = vld [vmem:[%s1 + $0x10] sm:$0xff]
        %v307 = vld [vmem:[%s1 + $0x18] sm:$0xff]
        %v308 = vld [vmem:[%s1 + $0x20] sm:$0xff]
        %v309 = vld [vmem:[%s1 + $0x28] sm:$0xff]
        %v310 = vld [vmem:[%s1 + $0x30] sm:$0xff]
        %v311 = vld [vmem:[%s1 + $0x38] sm:$0xff]
        %v312 = vld [vmem:[%s1 + $0x40] sm:$0xff]
        %v313 = vld [vmem:[%s1 + $0x48] sm:$0xff]
        %v314 = vld [vmem:[%s1 + $0x50] sm:$0xff]
        %v315 = vld [vmem:[%s1 + $0x58] sm:$0xff]
        %v316 = vld [vmem:[%s1 + $0x60] sm:$0xff]
        %v317 = vld [vmem:[%s1 + $0x68] sm:$0xff]
        %v318 = vld [vmem:[%s1 + $0x70] sm:$0xff]
        %v319 = vld [vmem:[%s1 + $0x78] sm:$0xff]
        %v320 = vld [vmem:[%s294] sm:$0xff]
        %v321 = vld [vmem:[%s294 + $0x8] sm:$0xff]
        %v322 = vld [vmem:[%s294 + $0x10] sm:$0xff]
        %v323 = vld [vmem:[%s294 + $0x18] sm:$0xff]
        %v324 = vld [vmem:[%s294 + $0x20] sm:$0xff]
        %v325 = vld [vmem:[%s294 + $0x28] sm:$0xff]
        %v326 = vld [vmem:[%s294 + $0x30] sm:$0xff]
        %v327 = vld [vmem:[%s294 + $0x38] sm:$0xff]
        %v328 = vld [vmem:[%s294 + $0x40] sm:$0xff]
        %v329 = vld [vmem:[%s294 + $0x48] sm:$0xff]
        %v330 = vld [vmem:[%s294 + $0x50] sm:$0xff]
        %v331 = vld [vmem:[%s294 + $0x58] sm:$0xff]
        %v332 = vld [vmem:[%s294 + $0x60] sm:$0xff]
        %v333 = vld [vmem:[%s294 + $0x68] sm:$0xff]
        %v334 = vld [vmem:[%s294 + $0x70] sm:$0xff]
        %v335 = vld [vmem:[%s294 + $0x78] sm:$0xff]
        %v336 = vld [vmem:[%s294 + $0x80] sm:$0xff]
        %v337 = vld [vmem:[%s294 + $0x88] sm:$0xff]
        %v338 = vld [vmem:[%s294 + $0x90] sm:$0xff]
        %v339 = vld [vmem:[%s294 + $0x98] sm:$0xff]
        %v340 = vld [vmem:[%s294 + $0xa0] sm:$0xff]
        %v341 = vld [vmem:[%s294 + $0xa8] sm:$0xff]
        %v342 = vld [vmem:[%s294 + $0xb0] sm:$0xff]
        %v343 = vld [vmem:[%s294 + $0xb8] sm:$0xff]
        %v344 = vld [vmem:[%s294 + $0xc0] sm:$0xff]
        %v345 = vld [vmem:[%s294 + $0xc8] sm:$0xff]
        %v346 = vld [vmem:[%s294 + $0xd0] sm:$0xff]
        %v347 = vld [vmem:[%s294 + $0xd8] sm:$0xff]
        %v348 = vld [vmem:[%s294 + $0xe0] sm:$0xff]
        %v349 = vld [vmem:[%s294 + $0xe8] sm:$0xff]
        %v350 = vld [vmem:[%s294 + $0xf0] sm:$0xff]
        %v351 = vld [vmem:[%s294 + $0xf8] sm:$0xff]
        %v352 = vld [vmem:[%s2] sm:$0xff]
        %v353 = vld [vmem:[%s2 + $0x8] sm:$0xff]
        %v354 = vld [vmem:[%s2 + $0x10] sm:$0xff]
        %v355 = vld [vmem:[%s2 + $0x18] sm:$0xff]
        %v356 = vld [vmem:[%s2 + $0x20] sm:$0xff]
        %v357 = vld [vmem:[%s2 + $0x28] sm:$0xff]
        %v358 = vld [vmem:[%s2 + $0x30] sm:$0xff]
        %v359 = vld [vmem:[%s2 + $0x38] sm:$0xff]
        %v360 = vld [vmem:[%s2 + $0x40] sm:$0xff]
        %v361 = vld [vmem:[%s2 + $0x48] sm:$0xff]
        %v362 = vld [vmem:[%s2 + $0x50] sm:$0xff]
        %v363 = vld [vmem:[%s2 + $0x58] sm:$0xff]
        %v364 = vld [vmem:[%s2 + $0x60] sm:$0xff]
        %v365 = vld [vmem:[%s2 + $0x68] sm:$0xff]
        %v366 = vld [vmem:[%s2 + $0x70] sm:$0xff]
        %v367 = vld [vmem:[%s2 + $0x78] sm:$0xff]
        %369 = vset.pattern.permute.xlu0 0
        %370 = vperm.xlu0 %369, %v352
        %v371 = vpop.permute.xlu0 %370
        %374 = vset.pattern.permute.xlu0 0
        %375 = vperm.xlu0 %374, %v353
        %v376 = vpop.permute.xlu0 %375
        %379 = vset.pattern.permute.xlu0 0
        %380 = vperm.xlu0 %379, %v354
        %v381 = vpop.permute.xlu0 %380
        %384 = vset.pattern.permute.xlu0 0
        %385 = vperm.xlu0 %384, %v355
        %v386 = vpop.permute.xlu0 %385
        %389 = vset.pattern.permute.xlu0 0
        %390 = vperm.xlu0 %389, %v356
        %v391 = vpop.permute.xlu0 %390
        %394 = vset.pattern.permute.xlu0 0
        %395 = vperm.xlu0 %394, %v357
        %v396 = vpop.permute.xlu0 %395
        %399 = vset.pattern.permute.xlu0 0
        %400 = vperm.xlu0 %399, %v358
        %v401 = vpop.permute.xlu0 %400
        %404 = vset.pattern.permute.xlu0 0
        %405 = vperm.xlu0 %404, %v359
        %v406 = vpop.permute.xlu0 %405
        %409 = vset.pattern.permute.xlu0 0
        %410 = vperm.xlu0 %409, %v360
        %v411 = vpop.permute.xlu0 %410
        %414 = vset.pattern.permute.xlu0 0
        %415 = vperm.xlu0 %414, %v361
        %v416 = vpop.permute.xlu0 %415
        %419 = vset.pattern.permute.xlu0 0
        %420 = vperm.xlu0 %419, %v362
        %v421 = vpop.permute.xlu0 %420
        %424 = vset.pattern.permute.xlu0 0
        %425 = vperm.xlu0 %424, %v363
        %v426 = vpop.permute.xlu0 %425
        %429 = vset.pattern.permute.xlu0 0
        %430 = vperm.xlu0 %429, %v364
        %v431 = vpop.permute.xlu0 %430
        %434 = vset.pattern.permute.xlu0 0
        %435 = vperm.xlu0 %434, %v365
        %v436 = vpop.permute.xlu0 %435
        %439 = vset.pattern.permute.xlu0 0
        %440 = vperm.xlu0 %439, %v366
        %v441 = vpop.permute.xlu0 %440
        %444 = vset.pattern.permute.xlu0 0
        %445 = vperm.xlu0 %444, %v367
        %v446 = vpop.permute.xlu0 %445
        %vm448 = vcmask 130048
        %v450 = vsel %vm448, %v304, 0
        %v453 = vsel %vm448, %v305, 0
        %v456 = vsel %vm448, %v306, 0
        %v459 = vsel %vm448, %v307, 0
        %v462 = vsel %vm448, %v308, 0
        %v465 = vsel %vm448, %v309, 0
        %v468 = vsel %vm448, %v310, 0
        %v471 = vsel %vm448, %v311, 0
        %v474 = vsel %vm448, %v312, 0
        %v477 = vsel %vm448, %v313, 0
        %v480 = vsel %vm448, %v314, 0
        %v483 = vsel %vm448, %v315, 0
        %v486 = vsel %vm448, %v316, 0
        %v489 = vsel %vm448, %v317, 0
        %v492 = vsel %vm448, %v318, 0
        %v495 = vsel %vm448, %v319, 0
        %v498 = vsel %vm448, %v320, 0
        %v501 = vsel %vm448, %v321, 0
        %v504 = vsel %vm448, %v322, 0
        %v507 = vsel %vm448, %v323, 0
        %v510 = vsel %vm448, %v324, 0
        %v513 = vsel %vm448, %v325, 0
        %v516 = vsel %vm448, %v326, 0
        %v519 = vsel %vm448, %v327, 0
        %v522 = vsel %vm448, %v328, 0
        %v525 = vsel %vm448, %v329, 0
        %v528 = vsel %vm448, %v330, 0
        %v531 = vsel %vm448, %v331, 0
        %v534 = vsel %vm448, %v332, 0
        %v537 = vsel %vm448, %v333, 0
        %v540 = vsel %vm448, %v334, 0
        %v543 = vsel %vm448, %v335, 0
        %v546 = vsel %vm448, %v336, 0
        %v549 = vsel %vm448, %v337, 0
        %v552 = vsel %vm448, %v338, 0
        %v555 = vsel %vm448, %v339, 0
        %v558 = vsel %vm448, %v340, 0
        %v561 = vsel %vm448, %v341, 0
        %v564 = vsel %vm448, %v342, 0
        %v567 = vsel %vm448, %v343, 0
        %v570 = vsel %vm448, %v344, 0
        %v573 = vsel %vm448, %v345, 0
        %v576 = vsel %vm448, %v346, 0
        %v579 = vsel %vm448, %v347, 0
        %v582 = vsel %vm448, %v348, 0
        %v585 = vsel %vm448, %v349, 0
        %v588 = vsel %vm448, %v350, 0
        %v591 = vsel %vm448, %v351, 0
        %593 = vmatpush.xpose.msra.mxu0 %v543
        %594 = vmatpush.xpose.msra.mxu0 %v540
        %595 = vmatpush.xpose.msra.mxu0 %v537
        %596 = vmatpush.xpose.msra.mxu0 %v534
        %597 = vmatpush.xpose.msra.mxu0 %v531
        %598 = vmatpush.xpose.msra.mxu0 %v528
        %599 = vmatpush.xpose.msra.mxu0 %v525
        %600 = vmatpush.xpose.msra.mxu0 %v522
        %601 = vmatpush.xpose.msra.mxu0 %v519
        %602 = vmatpush.xpose.msra.mxu0 %v516
        %603 = vmatpush.xpose.msra.mxu0 %v513
        %604 = vmatpush.xpose.msra.mxu0 %v510
        %605 = vmatpush.xpose.msra.mxu0 %v507
        %606 = vmatpush.xpose.msra.mxu0 %v504
        %607 = vmatpush.xpose.msra.mxu0 %v501
        %608 = vmatpush.xpose.msra.mxu0 %v498
        %609 = vmatmul.f32.gmra.mxu0 %v450
        %v610 = vpop.f32.mrf.mxu0
        %v611 = vadd.f32 %v371, %v610
        %612 = vmatmul.f32.gmra.mxu0 %v453
        %v613 = vpop.f32.mrf.mxu0
        %v614 = vadd.f32 %v376, %v613
        %615 = vmatmul.f32.gmra.mxu0 %v456
        %v616 = vpop.f32.mrf.mxu0
        %v617 = vadd.f32 %v381, %v616
        %618 = vmatmul.f32.gmra.mxu0 %v459
        %v619 = vpop.f32.mrf.mxu0
        %v620 = vadd.f32 %v386, %v619
        %621 = vmatmul.f32.gmra.mxu0 %v462
        %v622 = vpop.f32.mrf.mxu0
        %v623 = vadd.f32 %v391, %v622
        %624 = vmatmul.f32.gmra.mxu0 %v465
        %v625 = vpop.f32.mrf.mxu0
        %v626 = vadd.f32 %v396, %v625
        %627 = vmatmul.f32.gmra.mxu0 %v468
        %v628 = vpop.f32.mrf.mxu0
        %v629 = vadd.f32 %v401, %v628
        %630 = vmatmul.f32.gmra.mxu0 %v471
        %v631 = vpop.f32.mrf.mxu0
        %v632 = vadd.f32 %v406, %v631
        %633 = vmatmul.f32.gmra.mxu0 %v474
        %v634 = vpop.f32.mrf.mxu0
        %v635 = vadd.f32 %v411, %v634
        %636 = vmatmul.f32.gmra.mxu0 %v477
        %v637 = vpop.f32.mrf.mxu0
        %v638 = vadd.f32 %v416, %v637
        %639 = vmatmul.f32.gmra.mxu0 %v480
        %v640 = vpop.f32.mrf.mxu0
        %v641 = vadd.f32 %v421, %v640
        %642 = vmatmul.f32.gmra.mxu0 %v483
        %v643 = vpop.f32.mrf.mxu0
        %v644 = vadd.f32 %v426, %v643
        %645 = vmatmul.f32.gmra.mxu0 %v486
        %v646 = vpop.f32.mrf.mxu0
        %v647 = vadd.f32 %v431, %v646
        %648 = vmatmul.f32.gmra.mxu0 %v489
        %v649 = vpop.f32.mrf.mxu0
        %v650 = vadd.f32 %v436, %v649
        %651 = vmatmul.f32.gmra.mxu0 %v492
        %v652 = vpop.f32.mrf.mxu0
        %v653 = vadd.f32 %v441, %v652
        %654 = vmatmul.f32.gmra.mxu0 %v495
        %v655 = vpop.f32.mrf.mxu0
        %v656 = vadd.f32 %v446, %v655
        %657 = vdwg.mxu0
        %658 = vmatpush.xpose.msra.mxu0 %v591
        %659 = vmatpush.xpose.msra.mxu0 %v588
        %660 = vmatpush.xpose.msra.mxu0 %v585
        %661 = vmatpush.xpose.msra.mxu0 %v582
        %662 = vmatpush.xpose.msra.mxu0 %v579
        %663 = vmatpush.xpose.msra.mxu0 %v576
        %664 = vmatpush.xpose.msra.mxu0 %v573
        %665 = vmatpush.xpose.msra.mxu0 %v570
        %666 = vmatpush.xpose.msra.mxu0 %v567
        %667 = vmatpush.xpose.msra.mxu0 %v564
        %668 = vmatpush.xpose.msra.mxu0 %v561
        %669 = vmatpush.xpose.msra.mxu0 %v558
        %670 = vmatpush.xpose.msra.mxu0 %v555
        %671 = vmatpush.xpose.msra.mxu0 %v552
        %672 = vmatpush.xpose.msra.mxu0 %v549
        %673 = vmatpush.xpose.msra.mxu0 %v546
        %674 = vmatmul.f32.gmra.mxu0 %v450
        %v675 = vpop.f32.mrf.mxu0
        %v676 = vadd.f32 %v371, %v675
        %677 = vmatmul.f32.gmra.mxu0 %v453
        %v678 = vpop.f32.mrf.mxu0
        %v679 = vadd.f32 %v376, %v678
        %680 = vmatmul.f32.gmra.mxu0 %v456
        %v681 = vpop.f32.mrf.mxu0
        %v682 = vadd.f32 %v381, %v681
        %683 = vmatmul.f32.gmra.mxu0 %v459
        %v684 = vpop.f32.mrf.mxu0
        %v685 = vadd.f32 %v386, %v684
        %686 = vmatmul.f32.gmra.mxu0 %v462
        %v687 = vpop.f32.mrf.mxu0
        %v688 = vadd.f32 %v391, %v687
        %689 = vmatmul.f32.gmra.mxu0 %v465
        %v690 = vpop.f32.mrf.mxu0
        %v691 = vadd.f32 %v396, %v690
        %692 = vmatmul.f32.gmra.mxu0 %v468
        %v693 = vpop.f32.mrf.mxu0
        %v694 = vadd.f32 %v401, %v693
        %695 = vmatmul.f32.gmra.mxu0 %v471
        %v696 = vpop.f32.mrf.mxu0
        %v697 = vadd.f32 %v406, %v696
        %698 = vmatmul.f32.gmra.mxu0 %v474
        %v699 = vpop.f32.mrf.mxu0
        %v700 = vadd.f32 %v411, %v699
        %701 = vmatmul.f32.gmra.mxu0 %v477
        %v702 = vpop.f32.mrf.mxu0
        %v703 = vadd.f32 %v416, %v702
        %704 = vmatmul.f32.gmra.mxu0 %v480
        %v705 = vpop.f32.mrf.mxu0
        %v706 = vadd.f32 %v421, %v705
        %707 = vmatmul.f32.gmra.mxu0 %v483
        %v708 = vpop.f32.mrf.mxu0
        %v709 = vadd.f32 %v426, %v708
        %710 = vmatmul.f32.gmra.mxu0 %v486
        %v711 = vpop.f32.mrf.mxu0
        %v712 = vadd.f32 %v431, %v711
        %713 = vmatmul.f32.gmra.mxu0 %v489
        %v714 = vpop.f32.mrf.mxu0
        %v715 = vadd.f32 %v436, %v714
        %716 = vmatmul.f32.gmra.mxu0 %v492
        %v717 = vpop.f32.mrf.mxu0
        %v718 = vadd.f32 %v441, %v717
        %719 = vmatmul.f32.gmra.mxu0 %v495
        %v720 = vpop.f32.mrf.mxu0
        %v721 = vadd.f32 %v446, %v720
        %722 = vdwg.mxu0
        %v723 = vmul.f32 %v611, 0.15915494
        %v724 = vmul.f32 %v676, 0.15915494
        %v725 = vmul.f32 %v614, 0.15915494
        %v726 = vmul.f32 %v679, 0.15915494
        %v727 = vmul.f32 %v617, 0.15915494
        %v728 = vmul.f32 %v682, 0.15915494
        %v729 = vmul.f32 %v620, 0.15915494
        %v730 = vmul.f32 %v685, 0.15915494
        %v731 = vmul.f32 %v623, 0.15915494
        %v732 = vmul.f32 %v688, 0.15915494
        %v733 = vmul.f32 %v626, 0.15915494
        %v734 = vmul.f32 %v691, 0.15915494
        %v735 = vmul.f32 %v629, 0.15915494
        %v736 = vmul.f32 %v694, 0.15915494
        %v737 = vmul.f32 %v632, 0.15915494
        %v738 = vmul.f32 %v697, 0.15915494
        %v739 = vmul.f32 %v635, 0.15915494
        %v740 = vmul.f32 %v700, 0.15915494
        %v741 = vmul.f32 %v638, 0.15915494
        %v742 = vmul.f32 %v703, 0.15915494
        %v743 = vmul.f32 %v641, 0.15915494
        %v744 = vmul.f32 %v706, 0.15915494
        %v745 = vmul.f32 %v644, 0.15915494
        %v746 = vmul.f32 %v709, 0.15915494
        %v747 = vmul.f32 %v647, 0.15915494
        %v748 = vmul.f32 %v712, 0.15915494
        %v749 = vmul.f32 %v650, 0.15915494
        %v750 = vmul.f32 %v715, 0.15915494
        %v751 = vmul.f32 %v653, 0.15915494
        %v752 = vmul.f32 %v718, 0.15915494
        %v753 = vmul.f32 %v656, 0.15915494
        %v754 = vmul.f32 %v721, 0.15915494
        %v755 = vadd.f32 %v723, 0.5
        %v756 = vadd.f32 %v724, 0.5
        %v757 = vadd.f32 %v725, 0.5
        %v758 = vadd.f32 %v726, 0.5
        %v759 = vadd.f32 %v727, 0.5
        %v760 = vadd.f32 %v728, 0.5
        %v761 = vadd.f32 %v729, 0.5
        %v762 = vadd.f32 %v730, 0.5
        %v763 = vadd.f32 %v731, 0.5
        %v764 = vadd.f32 %v732, 0.5
        %v765 = vadd.f32 %v733, 0.5
        %v766 = vadd.f32 %v734, 0.5
        %v767 = vadd.f32 %v735, 0.5
        %v768 = vadd.f32 %v736, 0.5
        %v769 = vadd.f32 %v737, 0.5
        %v770 = vadd.f32 %v738, 0.5
        %v771 = vadd.f32 %v739, 0.5
        %v772 = vadd.f32 %v740, 0.5
        %v773 = vadd.f32 %v741, 0.5
        %v774 = vadd.f32 %v742, 0.5
        %v775 = vadd.f32 %v743, 0.5
        %v776 = vadd.f32 %v744, 0.5
        %v777 = vadd.f32 %v745, 0.5
        %v778 = vadd.f32 %v746, 0.5
        %v779 = vadd.f32 %v747, 0.5
        %v780 = vadd.f32 %v748, 0.5
        %v781 = vadd.f32 %v749, 0.5
        %v782 = vadd.f32 %v750, 0.5
        %v783 = vadd.f32 %v751, 0.5
        %v784 = vadd.f32 %v752, 0.5
        %v785 = vadd.f32 %v753, 0.5
        %v786 = vadd.f32 %v754, 0.5
        %v787 = vfloor.f32 %v755
        %v788 = vfloor.f32 %v756
        %v789 = vfloor.f32 %v757
        %v790 = vfloor.f32 %v758
        %v791 = vfloor.f32 %v759
        %v792 = vfloor.f32 %v760
        %v793 = vfloor.f32 %v761
        %v794 = vfloor.f32 %v762
        %v795 = vfloor.f32 %v763
        %v796 = vfloor.f32 %v764
        %v797 = vfloor.f32 %v765
        %v798 = vfloor.f32 %v766
        %v799 = vfloor.f32 %v767
        %v800 = vfloor.f32 %v768
        %v801 = vfloor.f32 %v769
        %v802 = vfloor.f32 %v770
        %v803 = vfloor.f32 %v771
        %v804 = vfloor.f32 %v772
        %v805 = vfloor.f32 %v773
        %v806 = vfloor.f32 %v774
        %v807 = vfloor.f32 %v775
        %v808 = vfloor.f32 %v776
        %v809 = vfloor.f32 %v777
        %v810 = vfloor.f32 %v778
        %v811 = vfloor.f32 %v779
        %v812 = vfloor.f32 %v780
        %v813 = vfloor.f32 %v781
        %v814 = vfloor.f32 %v782
        %v815 = vfloor.f32 %v783
        %v816 = vfloor.f32 %v784
        %v817 = vfloor.f32 %v785
        %v818 = vfloor.f32 %v786
        %v819 = vmul.f32 %v787, 6.2831855
        %v820 = vmul.f32 %v788, 6.2831855
        %v821 = vmul.f32 %v789, 6.2831855
        %v822 = vmul.f32 %v790, 6.2831855
        %v823 = vmul.f32 %v791, 6.2831855
        %v824 = vmul.f32 %v792, 6.2831855
        %v825 = vmul.f32 %v793, 6.2831855
        %v826 = vmul.f32 %v794, 6.2831855
        %v827 = vmul.f32 %v795, 6.2831855
        %v828 = vmul.f32 %v796, 6.2831855
        %v829 = vmul.f32 %v797, 6.2831855
        %v830 = vmul.f32 %v798, 6.2831855
        %v831 = vmul.f32 %v799, 6.2831855
        %v832 = vmul.f32 %v800, 6.2831855
        %v833 = vmul.f32 %v801, 6.2831855
        %v834 = vmul.f32 %v802, 6.2831855
        %v835 = vmul.f32 %v803, 6.2831855
        %v836 = vmul.f32 %v804, 6.2831855
        %v837 = vmul.f32 %v805, 6.2831855
        %v838 = vmul.f32 %v806, 6.2831855
        %v839 = vmul.f32 %v807, 6.2831855
        %v840 = vmul.f32 %v808, 6.2831855
        %v841 = vmul.f32 %v809, 6.2831855
        %v842 = vmul.f32 %v810, 6.2831855
        %v843 = vmul.f32 %v811, 6.2831855
        %v844 = vmul.f32 %v812, 6.2831855
        %v845 = vmul.f32 %v813, 6.2831855
        %v846 = vmul.f32 %v814, 6.2831855
        %v847 = vmul.f32 %v815, 6.2831855
        %v848 = vmul.f32 %v816, 6.2831855
        %v849 = vmul.f32 %v817, 6.2831855
        %v850 = vmul.f32 %v818, 6.2831855
        %v851 = vsub.f32 %v611, %v819
        %v852 = vsub.f32 %v676, %v820
        %v853 = vsub.f32 %v614, %v821
        %v854 = vsub.f32 %v679, %v822
        %v855 = vsub.f32 %v617, %v823
        %v856 = vsub.f32 %v682, %v824
        %v857 = vsub.f32 %v620, %v825
        %v858 = vsub.f32 %v685, %v826
        %v859 = vsub.f32 %v623, %v827
        %v860 = vsub.f32 %v688, %v828
        %v861 = vsub.f32 %v626, %v829
        %v862 = vsub.f32 %v691, %v830
        %v863 = vsub.f32 %v629, %v831
        %v864 = vsub.f32 %v694, %v832
        %v865 = vsub.f32 %v632, %v833
        %v866 = vsub.f32 %v697, %v834
        %v867 = vsub.f32 %v635, %v835
        %v868 = vsub.f32 %v700, %v836
        %v869 = vsub.f32 %v638, %v837
        %v870 = vsub.f32 %v703, %v838
        %v871 = vsub.f32 %v641, %v839
        %v872 = vsub.f32 %v706, %v840
        %v873 = vsub.f32 %v644, %v841
        %v874 = vsub.f32 %v709, %v842
        %v875 = vsub.f32 %v647, %v843
        %v876 = vsub.f32 %v712, %v844
        %v877 = vsub.f32 %v650, %v845
        %v878 = vsub.f32 %v715, %v846
        %v879 = vsub.f32 %v653, %v847
        %v880 = vsub.f32 %v718, %v848
        %v881 = vsub.f32 %v656, %v849
        %v882 = vsub.f32 %v721, %v850
        %v883 = vand.u32 2147483647, %v851
        %v884 = vand.u32 2147483647, %v852
        %v885 = vand.u32 2147483647, %v853
        %v886 = vand.u32 2147483647, %v854
        %v887 = vand.u32 2147483647, %v855
        %v888 = vand.u32 2147483647, %v856
        %v889 = vand.u32 2147483647, %v857
        %v890 = vand.u32 2147483647, %v858
        %v891 = vand.u32 2147483647, %v859
        %v892 = vand.u32 2147483647, %v860
        %v893 = vand.u32 2147483647, %v861
        %v894 = vand.u32 2147483647, %v862
        %v895 = vand.u32 2147483647, %v863
        %v896 = vand.u32 2147483647, %v864
        %v897 = vand.u32 2147483647, %v865
        %v898 = vand.u32 2147483647, %v866
        %v899 = vand.u32 2147483647, %v867
        %v900 = vand.u32 2147483647, %v868
        %v901 = vand.u32 2147483647, %v869
        %v902 = vand.u32 2147483647, %v870
        %v903 = vand.u32 2147483647, %v871
        %v904 = vand.u32 2147483647, %v872
        %v905 = vand.u32 2147483647, %v873
        %v906 = vand.u32 2147483647, %v874
        %v907 = vand.u32 2147483647, %v875
        %v908 = vand.u32 2147483647, %v876
        %v909 = vand.u32 2147483647, %v877
        %v910 = vand.u32 2147483647, %v878
        %v911 = vand.u32 2147483647, %v879
        %v912 = vand.u32 2147483647, %v880
        %v913 = vand.u32 2147483647, %v881
        %v914 = vand.u32 2147483647, %v882
        %vm915 = vcmp.gt.f32.partialorder %v883, 1.5707964
        %vm916 = vcmp.gt.f32.partialorder %v884, 1.5707964
        %vm917 = vcmp.gt.f32.partialorder %v885, 1.5707964
        %vm918 = vcmp.gt.f32.partialorder %v886, 1.5707964
        %vm919 = vcmp.gt.f32.partialorder %v887, 1.5707964
        %vm920 = vcmp.gt.f32.partialorder %v888, 1.5707964
        %vm921 = vcmp.gt.f32.partialorder %v889, 1.5707964
        %vm922 = vcmp.gt.f32.partialorder %v890, 1.5707964
        %vm923 = vcmp.gt.f32.partialorder %v891, 1.5707964
        %vm924 = vcmp.gt.f32.partialorder %v892, 1.5707964
        %vm925 = vcmp.gt.f32.partialorder %v893, 1.5707964
        %vm926 = vcmp.gt.f32.partialorder %v894, 1.5707964
        %vm927 = vcmp.gt.f32.partialorder %v895, 1.5707964
        %vm928 = vcmp.gt.f32.partialorder %v896, 1.5707964
        %vm929 = vcmp.gt.f32.partialorder %v897, 1.5707964
        %vm930 = vcmp.gt.f32.partialorder %v898, 1.5707964
        %vm931 = vcmp.gt.f32.partialorder %v899, 1.5707964
        %vm932 = vcmp.gt.f32.partialorder %v900, 1.5707964
        %vm933 = vcmp.gt.f32.partialorder %v901, 1.5707964
        %vm934 = vcmp.gt.f32.partialorder %v902, 1.5707964
        %vm935 = vcmp.gt.f32.partialorder %v903, 1.5707964
        %vm936 = vcmp.gt.f32.partialorder %v904, 1.5707964
        %vm937 = vcmp.gt.f32.partialorder %v905, 1.5707964
        %vm938 = vcmp.gt.f32.partialorder %v906, 1.5707964
        %vm939 = vcmp.gt.f32.partialorder %v907, 1.5707964
        %vm940 = vcmp.gt.f32.partialorder %v908, 1.5707964
        %vm941 = vcmp.gt.f32.partialorder %v909, 1.5707964
        %vm942 = vcmp.gt.f32.partialorder %v910, 1.5707964
        %vm943 = vcmp.gt.f32.partialorder %v911, 1.5707964
        %vm944 = vcmp.gt.f32.partialorder %v912, 1.5707964
        %vm945 = vcmp.gt.f32.partialorder %v913, 1.5707964
        %vm946 = vcmp.gt.f32.partialorder %v914, 1.5707964
        %vm947 = vcmp.ge.f32.partialorder %v851, 0.0
        %vm948 = vcmp.ge.f32.partialorder %v852, 0.0
        %vm949 = vcmp.ge.f32.partialorder %v853, 0.0
        %vm950 = vcmp.ge.f32.partialorder %v854, 0.0
        %vm951 = vcmp.ge.f32.partialorder %v855, 0.0
        %vm952 = vcmp.ge.f32.partialorder %v856, 0.0
        %vm953 = vcmp.ge.f32.partialorder %v857, 0.0
        %vm954 = vcmp.ge.f32.partialorder %v858, 0.0
        %vm955 = vcmp.ge.f32.partialorder %v859, 0.0
        %vm956 = vcmp.ge.f32.partialorder %v860, 0.0
        %vm957 = vcmp.ge.f32.partialorder %v861, 0.0
        %vm958 = vcmp.ge.f32.partialorder %v862, 0.0
        %vm959 = vcmp.ge.f32.partialorder %v863, 0.0
        %vm960 = vcmp.ge.f32.partialorder %v864, 0.0
        %vm961 = vcmp.ge.f32.partialorder %v865, 0.0
        %vm962 = vcmp.ge.f32.partialorder %v866, 0.0
        %vm963 = vcmp.ge.f32.partialorder %v867, 0.0
        %vm964 = vcmp.ge.f32.partialorder %v868, 0.0
        %vm965 = vcmp.ge.f32.partialorder %v869, 0.0
        %vm966 = vcmp.ge.f32.partialorder %v870, 0.0
        %vm967 = vcmp.ge.f32.partialorder %v871, 0.0
        %vm968 = vcmp.ge.f32.partialorder %v872, 0.0
        %vm969 = vcmp.ge.f32.partialorder %v873, 0.0
        %vm970 = vcmp.ge.f32.partialorder %v874, 0.0
        %vm971 = vcmp.ge.f32.partialorder %v875, 0.0
        %vm972 = vcmp.ge.f32.partialorder %v876, 0.0
        %vm973 = vcmp.ge.f32.partialorder %v877, 0.0
        %vm974 = vcmp.ge.f32.partialorder %v878, 0.0
        %vm975 = vcmp.ge.f32.partialorder %v879, 0.0
        %vm976 = vcmp.ge.f32.partialorder %v880, 0.0
        %vm977 = vcmp.ge.f32.partialorder %v881, 0.0
        %vm978 = vcmp.ge.f32.partialorder %v882, 0.0
        %v979 = vsel %vm947, 3.1415927, -3.1415927
        %v980 = vsel %vm948, 3.1415927, -3.1415927
        %v981 = vsel %vm949, 3.1415927, -3.1415927
        %v982 = vsel %vm950, 3.1415927, -3.1415927
        %v983 = vsel %vm951, 3.1415927, -3.1415927
        %v984 = vsel %vm952, 3.1415927, -3.1415927
        %v985 = vsel %vm953, 3.1415927, -3.1415927
        %v986 = vsel %vm954, 3.1415927, -3.1415927
        %v987 = vsel %vm955, 3.1415927, -3.1415927
        %v988 = vsel %vm956, 3.1415927, -3.1415927
        %v989 = vsel %vm957, 3.1415927, -3.1415927
        %v990 = vsel %vm958, 3.1415927, -3.1415927
        %v991 = vsel %vm959, 3.1415927, -3.1415927
        %v992 = vsel %vm960, 3.1415927, -3.1415927
        %v993 = vsel %vm961, 3.1415927, -3.1415927
        %v994 = vsel %vm962, 3.1415927, -3.1415927
        %v995 = vsel %vm963, 3.1415927, -3.1415927
        %v996 = vsel %vm964, 3.1415927, -3.1415927
        %v997 = vsel %vm965, 3.1415927, -3.1415927
        %v998 = vsel %vm966, 3.1415927, -3.1415927
        %v999 = vsel %vm967, 3.1415927, -3.1415927
        %v1000 = vsel %vm968, 3.1415927, -3.1415927
        %v1001 = vsel %vm969, 3.1415927, -3.1415927
        %v1002 = vsel %vm970, 3.1415927, -3.1415927
        %v1003 = vsel %vm971, 3.1415927, -3.1415927
        %v1004 = vsel %vm972, 3.1415927, -3.1415927
        %v1005 = vsel %vm973, 3.1415927, -3.1415927
        %v1006 = vsel %vm974, 3.1415927, -3.1415927
        %v1007 = vsel %vm975, 3.1415927, -3.1415927
        %v1008 = vsel %vm976, 3.1415927, -3.1415927
        %v1009 = vsel %vm977, 3.1415927, -3.1415927
        %v1010 = vsel %vm978, 3.1415927, -3.1415927
        %v1011 = vsub.f32 %v979, %v851
        %v1012 = vsub.f32 %v980, %v852
        %v1013 = vsub.f32 %v981, %v853
        %v1014 = vsub.f32 %v982, %v854
        %v1015 = vsub.f32 %v983, %v855
        %v1016 = vsub.f32 %v984, %v856
        %v1017 = vsub.f32 %v985, %v857
        %v1018 = vsub.f32 %v986, %v858
        %v1019 = vsub.f32 %v987, %v859
        %v1020 = vsub.f32 %v988, %v860
        %v1021 = vsub.f32 %v989, %v861
        %v1022 = vsub.f32 %v990, %v862
        %v1023 = vsub.f32 %v991, %v863
        %v1024 = vsub.f32 %v992, %v864
        %v1025 = vsub.f32 %v993, %v865
        %v1026 = vsub.f32 %v994, %v866
        %v1027 = vsub.f32 %v995, %v867
        %v1028 = vsub.f32 %v996, %v868
        %v1029 = vsub.f32 %v997, %v869
        %v1030 = vsub.f32 %v998, %v870
        %v1031 = vsub.f32 %v999, %v871
        %v1032 = vsub.f32 %v1000, %v872
        %v1033 = vsub.f32 %v1001, %v873
        %v1034 = vsub.f32 %v1002, %v874
        %v1035 = vsub.f32 %v1003, %v875
        %v1036 = vsub.f32 %v1004, %v876
        %v1037 = vsub.f32 %v1005, %v877
        %v1038 = vsub.f32 %v1006, %v878
        %v1039 = vsub.f32 %v1007, %v879
        %v1040 = vsub.f32 %v1008, %v880
        %v1041 = vsub.f32 %v1009, %v881
        %v1042 = vsub.f32 %v1010, %v882
        %v1043 = vsel %vm915, %v1011, %v851
        %v1044 = vsel %vm916, %v1012, %v852
        %v1045 = vsel %vm917, %v1013, %v853
        %v1046 = vsel %vm918, %v1014, %v854
        %v1047 = vsel %vm919, %v1015, %v855
        %v1048 = vsel %vm920, %v1016, %v856
        %v1049 = vsel %vm921, %v1017, %v857
        %v1050 = vsel %vm922, %v1018, %v858
        %v1051 = vsel %vm923, %v1019, %v859
        %v1052 = vsel %vm924, %v1020, %v860
        %v1053 = vsel %vm925, %v1021, %v861
        %v1054 = vsel %vm926, %v1022, %v862
        %v1055 = vsel %vm927, %v1023, %v863
        %v1056 = vsel %vm928, %v1024, %v864
        %v1057 = vsel %vm929, %v1025, %v865
        %v1058 = vsel %vm930, %v1026, %v866
        %v1059 = vsel %vm931, %v1027, %v867
        %v1060 = vsel %vm932, %v1028, %v868
        %v1061 = vsel %vm933, %v1029, %v869
        %v1062 = vsel %vm934, %v1030, %v870
        %v1063 = vsel %vm935, %v1031, %v871
        %v1064 = vsel %vm936, %v1032, %v872
        %v1065 = vsel %vm937, %v1033, %v873
        %v1066 = vsel %vm938, %v1034, %v874
        %v1067 = vsel %vm939, %v1035, %v875
        %v1068 = vsel %vm940, %v1036, %v876
        %v1069 = vsel %vm941, %v1037, %v877
        %v1070 = vsel %vm942, %v1038, %v878
        %v1071 = vsel %vm943, %v1039, %v879
        %v1072 = vsel %vm944, %v1040, %v880
        %v1073 = vsel %vm945, %v1041, %v881
        %v1074 = vsel %vm946, %v1042, %v882
        %v1075 = vmul.f32 %v1043, %v1043
        %v1076 = vmul.f32 %v1044, %v1044
        %v1077 = vmul.f32 %v1045, %v1045
        %v1078 = vmul.f32 %v1046, %v1046
        %v1079 = vmul.f32 %v1047, %v1047
        %v1080 = vmul.f32 %v1048, %v1048
        %v1081 = vmul.f32 %v1049, %v1049
        %v1082 = vmul.f32 %v1050, %v1050
        %v1083 = vmul.f32 %v1051, %v1051
        %v1084 = vmul.f32 %v1052, %v1052
        %v1085 = vmul.f32 %v1053, %v1053
        %v1086 = vmul.f32 %v1054, %v1054
        %v1087 = vmul.f32 %v1055, %v1055
        %v1088 = vmul.f32 %v1056, %v1056
        %v1089 = vmul.f32 %v1057, %v1057
        %v1090 = vmul.f32 %v1058, %v1058
        %v1091 = vmul.f32 %v1059, %v1059
        %v1092 = vmul.f32 %v1060, %v1060
        %v1093 = vmul.f32 %v1061, %v1061
        %v1094 = vmul.f32 %v1062, %v1062
        %v1095 = vmul.f32 %v1063, %v1063
        %v1096 = vmul.f32 %v1064, %v1064
        %v1097 = vmul.f32 %v1065, %v1065
        %v1098 = vmul.f32 %v1066, %v1066
        %v1099 = vmul.f32 %v1067, %v1067
        %v1100 = vmul.f32 %v1068, %v1068
        %v1101 = vmul.f32 %v1069, %v1069
        %v1102 = vmul.f32 %v1070, %v1070
        %v1103 = vmul.f32 %v1071, %v1071
        %v1104 = vmul.f32 %v1072, %v1072
        %v1105 = vmul.f32 %v1073, %v1073
        %v1106 = vmul.f32 %v1074, %v1074
        %v1107 = vmul.f32 %v1075, 2.7557319e-06
        %v1108 = vmul.f32 %v1076, 2.7557319e-06
        %v1109 = vmul.f32 %v1077, 2.7557319e-06
        %v1110 = vmul.f32 %v1078, 2.7557319e-06
        %v1111 = vmul.f32 %v1079, 2.7557319e-06
        %v1112 = vmul.f32 %v1080, 2.7557319e-06
        %v1113 = vmul.f32 %v1081, 2.7557319e-06
        %v1114 = vmul.f32 %v1082, 2.7557319e-06
        %v1115 = vmul.f32 %v1083, 2.7557319e-06
        %v1116 = vmul.f32 %v1084, 2.7557319e-06
        %v1117 = vmul.f32 %v1085, 2.7557319e-06
        %v1118 = vmul.f32 %v1086, 2.7557319e-06
        %v1119 = vmul.f32 %v1087, 2.7557319e-06
        %v1120 = vmul.f32 %v1088, 2.7557319e-06
        %v1121 = vmul.f32 %v1089, 2.7557319e-06
        %v1122 = vmul.f32 %v1090, 2.7557319e-06
        %v1123 = vmul.f32 %v1091, 2.7557319e-06
        %v1124 = vmul.f32 %v1092, 2.7557319e-06
        %v1125 = vmul.f32 %v1093, 2.7557319e-06
        %v1126 = vmul.f32 %v1094, 2.7557319e-06
        %v1127 = vmul.f32 %v1095, 2.7557319e-06
        %v1128 = vmul.f32 %v1096, 2.7557319e-06
        %v1129 = vmul.f32 %v1097, 2.7557319e-06
        %v1130 = vmul.f32 %v1098, 2.7557319e-06
        %v1131 = vmul.f32 %v1099, 2.7557319e-06
        %v1132 = vmul.f32 %v1100, 2.7557319e-06
        %v1133 = vmul.f32 %v1101, 2.7557319e-06
        %v1134 = vmul.f32 %v1102, 2.7557319e-06
        %v1135 = vmul.f32 %v1103, 2.7557319e-06
        %v1136 = vmul.f32 %v1104, 2.7557319e-06
        %v1137 = vmul.f32 %v1105, 2.7557319e-06
        %v1138 = vmul.f32 %v1106, 2.7557319e-06
        %v1139 = vsub.f32 %v1107, 0.0001984127
        %v1140 = vsub.f32 %v1108, 0.0001984127
        %v1141 = vsub.f32 %v1109, 0.0001984127
        %v1142 = vsub.f32 %v1110, 0.0001984127
        %v1143 = vsub.f32 %v1111, 0.0001984127
        %v1144 = vsub.f32 %v1112, 0.0001984127
        %v1145 = vsub.f32 %v1113, 0.0001984127
        %v1146 = vsub.f32 %v1114, 0.0001984127
        %v1147 = vsub.f32 %v1115, 0.0001984127
        %v1148 = vsub.f32 %v1116, 0.0001984127
        %v1149 = vsub.f32 %v1117, 0.0001984127
        %v1150 = vsub.f32 %v1118, 0.0001984127
        %v1151 = vsub.f32 %v1119, 0.0001984127
        %v1152 = vsub.f32 %v1120, 0.0001984127
        %v1153 = vsub.f32 %v1121, 0.0001984127
        %v1154 = vsub.f32 %v1122, 0.0001984127
        %v1155 = vsub.f32 %v1123, 0.0001984127
        %v1156 = vsub.f32 %v1124, 0.0001984127
        %v1157 = vsub.f32 %v1125, 0.0001984127
        %v1158 = vsub.f32 %v1126, 0.0001984127
        %v1159 = vsub.f32 %v1127, 0.0001984127
        %v1160 = vsub.f32 %v1128, 0.0001984127
        %v1161 = vsub.f32 %v1129, 0.0001984127
        %v1162 = vsub.f32 %v1130, 0.0001984127
        %v1163 = vsub.f32 %v1131, 0.0001984127
        %v1164 = vsub.f32 %v1132, 0.0001984127
        %v1165 = vsub.f32 %v1133, 0.0001984127
        %v1166 = vsub.f32 %v1134, 0.0001984127
        %v1167 = vsub.f32 %v1135, 0.0001984127
        %v1168 = vsub.f32 %v1136, 0.0001984127
        %v1169 = vsub.f32 %v1137, 0.0001984127
        %v1170 = vsub.f32 %v1138, 0.0001984127
        %v1171 = vmul.f32 %v1139, %v1075
        %v1172 = vmul.f32 %v1140, %v1076
        %v1173 = vmul.f32 %v1141, %v1077
        %v1174 = vmul.f32 %v1142, %v1078
        %v1175 = vmul.f32 %v1143, %v1079
        %v1176 = vmul.f32 %v1144, %v1080
        %v1177 = vmul.f32 %v1145, %v1081
        %v1178 = vmul.f32 %v1146, %v1082
        %v1179 = vmul.f32 %v1147, %v1083
        %v1180 = vmul.f32 %v1148, %v1084
        %v1181 = vmul.f32 %v1149, %v1085
        %v1182 = vmul.f32 %v1150, %v1086
        %v1183 = vmul.f32 %v1151, %v1087
        %v1184 = vmul.f32 %v1152, %v1088
        %v1185 = vmul.f32 %v1153, %v1089
        %v1186 = vmul.f32 %v1154, %v1090
        %v1187 = vmul.f32 %v1155, %v1091
        %v1188 = vmul.f32 %v1156, %v1092
        %v1189 = vmul.f32 %v1157, %v1093
        %v1190 = vmul.f32 %v1158, %v1094
        %v1191 = vmul.f32 %v1159, %v1095
        %v1192 = vmul.f32 %v1160, %v1096
        %v1193 = vmul.f32 %v1161, %v1097
        %v1194 = vmul.f32 %v1162, %v1098
        %v1195 = vmul.f32 %v1163, %v1099
        %v1196 = vmul.f32 %v1164, %v1100
        %v1197 = vmul.f32 %v1165, %v1101
        %v1198 = vmul.f32 %v1166, %v1102
        %v1199 = vmul.f32 %v1167, %v1103
        %v1200 = vmul.f32 %v1168, %v1104
        %v1201 = vmul.f32 %v1169, %v1105
        %v1202 = vmul.f32 %v1170, %v1106
        %v1203 = vadd.f32 %v1171, 0.008333334
        %v1204 = vadd.f32 %v1172, 0.008333334
        %v1205 = vadd.f32 %v1173, 0.008333334
        %v1206 = vadd.f32 %v1174, 0.008333334
        %v1207 = vadd.f32 %v1175, 0.008333334
        %v1208 = vadd.f32 %v1176, 0.008333334
        %v1209 = vadd.f32 %v1177, 0.008333334
        %v1210 = vadd.f32 %v1178, 0.008333334
        %v1211 = vadd.f32 %v1179, 0.008333334
        %v1212 = vadd.f32 %v1180, 0.008333334
        %v1213 = vadd.f32 %v1181, 0.008333334
        %v1214 = vadd.f32 %v1182, 0.008333334
        %v1215 = vadd.f32 %v1183, 0.008333334
        %v1216 = vadd.f32 %v1184, 0.008333334
        %v1217 = vadd.f32 %v1185, 0.008333334
        %v1218 = vadd.f32 %v1186, 0.008333334
        %v1219 = vadd.f32 %v1187, 0.008333334
        %v1220 = vadd.f32 %v1188, 0.008333334
        %v1221 = vadd.f32 %v1189, 0.008333334
        %v1222 = vadd.f32 %v1190, 0.008333334
        %v1223 = vadd.f32 %v1191, 0.008333334
        %v1224 = vadd.f32 %v1192, 0.008333334
        %v1225 = vadd.f32 %v1193, 0.008333334
        %v1226 = vadd.f32 %v1194, 0.008333334
        %v1227 = vadd.f32 %v1195, 0.008333334
        %v1228 = vadd.f32 %v1196, 0.008333334
        %v1229 = vadd.f32 %v1197, 0.008333334
        %v1230 = vadd.f32 %v1198, 0.008333334
        %v1231 = vadd.f32 %v1199, 0.008333334
        %v1232 = vadd.f32 %v1200, 0.008333334
        %v1233 = vadd.f32 %v1201, 0.008333334
        %v1234 = vadd.f32 %v1202, 0.008333334
        %v1235 = vmul.f32 %v1203, %v1075
        %v1236 = vmul.f32 %v1204, %v1076
        %v1237 = vmul.f32 %v1205, %v1077
        %v1238 = vmul.f32 %v1206, %v1078
        %v1239 = vmul.f32 %v1207, %v1079
        %v1240 = vmul.f32 %v1208, %v1080
        %v1241 = vmul.f32 %v1209, %v1081
        %v1242 = vmul.f32 %v1210, %v1082
        %v1243 = vmul.f32 %v1211, %v1083
        %v1244 = vmul.f32 %v1212, %v1084
        %v1245 = vmul.f32 %v1213, %v1085
        %v1246 = vmul.f32 %v1214, %v1086
        %v1247 = vmul.f32 %v1215, %v1087
        %v1248 = vmul.f32 %v1216, %v1088
        %v1249 = vmul.f32 %v1217, %v1089
        %v1250 = vmul.f32 %v1218, %v1090
        %v1251 = vmul.f32 %v1219, %v1091
        %v1252 = vmul.f32 %v1220, %v1092
        %v1253 = vmul.f32 %v1221, %v1093
        %v1254 = vmul.f32 %v1222, %v1094
        %v1255 = vmul.f32 %v1223, %v1095
        %v1256 = vmul.f32 %v1224, %v1096
        %v1257 = vmul.f32 %v1225, %v1097
        %v1258 = vmul.f32 %v1226, %v1098
        %v1259 = vmul.f32 %v1227, %v1099
        %v1260 = vmul.f32 %v1228, %v1100
        %v1261 = vmul.f32 %v1229, %v1101
        %v1262 = vmul.f32 %v1230, %v1102
        %v1263 = vmul.f32 %v1231, %v1103
        %v1264 = vmul.f32 %v1232, %v1104
        %v1265 = vmul.f32 %v1233, %v1105
        %v1266 = vmul.f32 %v1234, %v1106
        %v1267 = vsub.f32 %v1235, 0.16666667
        %v1268 = vsub.f32 %v1236, 0.16666667
        %v1269 = vsub.f32 %v1237, 0.16666667
        %v1270 = vsub.f32 %v1238, 0.16666667
        %v1271 = vsub.f32 %v1239, 0.16666667
        %v1272 = vsub.f32 %v1240, 0.16666667
        %v1273 = vsub.f32 %v1241, 0.16666667
        %v1274 = vsub.f32 %v1242, 0.16666667
        %v1275 = vsub.f32 %v1243, 0.16666667
        %v1276 = vsub.f32 %v1244, 0.16666667
        %v1277 = vsub.f32 %v1245, 0.16666667
        %v1278 = vsub.f32 %v1246, 0.16666667
        %v1279 = vsub.f32 %v1247, 0.16666667
        %v1280 = vsub.f32 %v1248, 0.16666667
        %v1281 = vsub.f32 %v1249, 0.16666667
        %v1282 = vsub.f32 %v1250, 0.16666667
        %v1283 = vsub.f32 %v1251, 0.16666667
        %v1284 = vsub.f32 %v1252, 0.16666667
        %v1285 = vsub.f32 %v1253, 0.16666667
        %v1286 = vsub.f32 %v1254, 0.16666667
        %v1287 = vsub.f32 %v1255, 0.16666667
        %v1288 = vsub.f32 %v1256, 0.16666667
        %v1289 = vsub.f32 %v1257, 0.16666667
        %v1290 = vsub.f32 %v1258, 0.16666667
        %v1291 = vsub.f32 %v1259, 0.16666667
        %v1292 = vsub.f32 %v1260, 0.16666667
        %v1293 = vsub.f32 %v1261, 0.16666667
        %v1294 = vsub.f32 %v1262, 0.16666667
        %v1295 = vsub.f32 %v1263, 0.16666667
        %v1296 = vsub.f32 %v1264, 0.16666667
        %v1297 = vsub.f32 %v1265, 0.16666667
        %v1298 = vsub.f32 %v1266, 0.16666667
        %v1299 = vmul.f32 %v1043, %v1075
        %v1300 = vmul.f32 %v1044, %v1076
        %v1301 = vmul.f32 %v1045, %v1077
        %v1302 = vmul.f32 %v1046, %v1078
        %v1303 = vmul.f32 %v1047, %v1079
        %v1304 = vmul.f32 %v1048, %v1080
        %v1305 = vmul.f32 %v1049, %v1081
        %v1306 = vmul.f32 %v1050, %v1082
        %v1307 = vmul.f32 %v1051, %v1083
        %v1308 = vmul.f32 %v1052, %v1084
        %v1309 = vmul.f32 %v1053, %v1085
        %v1310 = vmul.f32 %v1054, %v1086
        %v1311 = vmul.f32 %v1055, %v1087
        %v1312 = vmul.f32 %v1056, %v1088
        %v1313 = vmul.f32 %v1057, %v1089
        %v1314 = vmul.f32 %v1058, %v1090
        %v1315 = vmul.f32 %v1059, %v1091
        %v1316 = vmul.f32 %v1060, %v1092
        %v1317 = vmul.f32 %v1061, %v1093
        %v1318 = vmul.f32 %v1062, %v1094
        %v1319 = vmul.f32 %v1063, %v1095
        %v1320 = vmul.f32 %v1064, %v1096
        %v1321 = vmul.f32 %v1065, %v1097
        %v1322 = vmul.f32 %v1066, %v1098
        %v1323 = vmul.f32 %v1067, %v1099
        %v1324 = vmul.f32 %v1068, %v1100
        %v1325 = vmul.f32 %v1069, %v1101
        %v1326 = vmul.f32 %v1070, %v1102
        %v1327 = vmul.f32 %v1071, %v1103
        %v1328 = vmul.f32 %v1072, %v1104
        %v1329 = vmul.f32 %v1073, %v1105
        %v1330 = vmul.f32 %v1074, %v1106
        %v1331 = vmul.f32 %v1299, %v1267
        %v1332 = vmul.f32 %v1300, %v1268
        %v1333 = vmul.f32 %v1301, %v1269
        %v1334 = vmul.f32 %v1302, %v1270
        %v1335 = vmul.f32 %v1303, %v1271
        %v1336 = vmul.f32 %v1304, %v1272
        %v1337 = vmul.f32 %v1305, %v1273
        %v1338 = vmul.f32 %v1306, %v1274
        %v1339 = vmul.f32 %v1307, %v1275
        %v1340 = vmul.f32 %v1308, %v1276
        %v1341 = vmul.f32 %v1309, %v1277
        %v1342 = vmul.f32 %v1310, %v1278
        %v1343 = vmul.f32 %v1311, %v1279
        %v1344 = vmul.f32 %v1312, %v1280
        %v1345 = vmul.f32 %v1313, %v1281
        %v1346 = vmul.f32 %v1314, %v1282
        %v1347 = vmul.f32 %v1315, %v1283
        %v1348 = vmul.f32 %v1316, %v1284
        %v1349 = vmul.f32 %v1317, %v1285
        %v1350 = vmul.f32 %v1318, %v1286
        %v1351 = vmul.f32 %v1319, %v1287
        %v1352 = vmul.f32 %v1320, %v1288
        %v1353 = vmul.f32 %v1321, %v1289
        %v1354 = vmul.f32 %v1322, %v1290
        %v1355 = vmul.f32 %v1323, %v1291
        %v1356 = vmul.f32 %v1324, %v1292
        %v1357 = vmul.f32 %v1325, %v1293
        %v1358 = vmul.f32 %v1326, %v1294
        %v1359 = vmul.f32 %v1327, %v1295
        %v1360 = vmul.f32 %v1328, %v1296
        %v1361 = vmul.f32 %v1329, %v1297
        %v1362 = vmul.f32 %v1330, %v1298
        %v1363 = vadd.f32 %v1043, %v1331
        %v1364 = vadd.f32 %v1044, %v1332
        %v1365 = vadd.f32 %v1045, %v1333
        %v1366 = vadd.f32 %v1046, %v1334
        %v1367 = vadd.f32 %v1047, %v1335
        %v1368 = vadd.f32 %v1048, %v1336
        %v1369 = vadd.f32 %v1049, %v1337
        %v1370 = vadd.f32 %v1050, %v1338
        %v1371 = vadd.f32 %v1051, %v1339
        %v1372 = vadd.f32 %v1052, %v1340
        %v1373 = vadd.f32 %v1053, %v1341
        %v1374 = vadd.f32 %v1054, %v1342
        %v1375 = vadd.f32 %v1055, %v1343
        %v1376 = vadd.f32 %v1056, %v1344
        %v1377 = vadd.f32 %v1057, %v1345
        %v1378 = vadd.f32 %v1058, %v1346
        %v1379 = vadd.f32 %v1059, %v1347
        %v1380 = vadd.f32 %v1060, %v1348
        %v1381 = vadd.f32 %v1061, %v1349
        %v1382 = vadd.f32 %v1062, %v1350
        %v1383 = vadd.f32 %v1063, %v1351
        %v1384 = vadd.f32 %v1064, %v1352
        %v1385 = vadd.f32 %v1065, %v1353
        %v1386 = vadd.f32 %v1066, %v1354
        %v1387 = vadd.f32 %v1067, %v1355
        %v1388 = vadd.f32 %v1068, %v1356
        %v1389 = vadd.f32 %v1069, %v1357
        %v1390 = vadd.f32 %v1070, %v1358
        %v1391 = vadd.f32 %v1071, %v1359
        %v1392 = vadd.f32 %v1072, %v1360
        %v1393 = vadd.f32 %v1073, %v1361
        %v1394 = vadd.f32 %v1074, %v1362
        %v1395 = vld [vmem:[%s3] sm:$0xf]
        %v1396 = vld [vmem:[%s3 + $0x4] sm:$0xf]
        %v1397 = vld [vmem:[%s3 + $0x8] sm:$0xf]
        %v1398 = vld [vmem:[%s3 + $0xc] sm:$0xf]
        %v1399 = vld [vmem:[%s3 + $0x10] sm:$0xf]
        %v1400 = vld [vmem:[%s3 + $0x14] sm:$0xf]
        %v1401 = vld [vmem:[%s3 + $0x18] sm:$0xf]
        %v1402 = vld [vmem:[%s3 + $0x1c] sm:$0xf]
        %v1403 = vld [vmem:[%s3 + $0x20] sm:$0xf]
        %v1404 = vld [vmem:[%s3 + $0x24] sm:$0xf]
        %v1405 = vld [vmem:[%s3 + $0x28] sm:$0xf]
        %v1406 = vld [vmem:[%s3 + $0x2c] sm:$0xf]
        %v1407 = vld [vmem:[%s3 + $0x30] sm:$0xf]
        %v1408 = vld [vmem:[%s3 + $0x34] sm:$0xf]
        %v1409 = vld [vmem:[%s3 + $0x38] sm:$0xf]
        %v1410 = vld [vmem:[%s3 + $0x3c] sm:$0xf]
        %v1411 = vpack.c.bf16 %v1365, %v1363
        %v1412 = vpack.c.bf16 %v1366, %v1364
        %v1413 = vpack.c.bf16 %v1369, %v1367
        %v1414 = vpack.c.bf16 %v1370, %v1368
        %v1415 = vpack.c.bf16 %v1373, %v1371
        %v1416 = vpack.c.bf16 %v1374, %v1372
        %v1417 = vpack.c.bf16 %v1377, %v1375
        %v1418 = vpack.c.bf16 %v1378, %v1376
        %v1419 = vpack.c.bf16 %v1381, %v1379
        %v1420 = vpack.c.bf16 %v1382, %v1380
        %v1421 = vpack.c.bf16 %v1385, %v1383
        %v1422 = vpack.c.bf16 %v1386, %v1384
        %v1423 = vpack.c.bf16 %v1389, %v1387
        %v1424 = vpack.c.bf16 %v1390, %v1388
        %v1425 = vpack.c.bf16 %v1393, %v1391
        %v1426 = vpack.c.bf16 %v1394, %v1392
        %v1427 = vld [vmem:[%s4] sm:$0xff]
        %v1428 = vld [vmem:[%s4 + $0x8] sm:$0xff]
        %v1429 = vld [vmem:[%s4 + $0x10] sm:$0xff]
        %v1430 = vld [vmem:[%s4 + $0x18] sm:$0xff]
        %v1431 = vld [vmem:[%s4 + $0x20] sm:$0xff]
        %v1432 = vld [vmem:[%s4 + $0x28] sm:$0xff]
        %v1433 = vld [vmem:[%s4 + $0x30] sm:$0xff]
        %v1434 = vld [vmem:[%s4 + $0x38] sm:$0xff]
        %v1435 = vld [vmem:[%s4 + $0x40] sm:$0xff]
        %v1436 = vld [vmem:[%s4 + $0x48] sm:$0xff]
        %v1437 = vld [vmem:[%s4 + $0x50] sm:$0xff]
        %v1438 = vld [vmem:[%s4 + $0x58] sm:$0xff]
        %v1439 = vld [vmem:[%s4 + $0x60] sm:$0xff]
        %v1440 = vld [vmem:[%s4 + $0x68] sm:$0xff]
        %v1441 = vld [vmem:[%s4 + $0x70] sm:$0xff]
        %v1442 = vld [vmem:[%s4 + $0x78] sm:$0xff]
        %1444 = vset.pattern.permute.xlu0 0
        %1445 = vperm.xlu0 %1444, %v1427
        %v1446 = vpop.permute.xlu0 %1445
        %1449 = vset.pattern.permute.xlu0 0
        %1450 = vperm.xlu0 %1449, %v1428
        %v1451 = vpop.permute.xlu0 %1450
        %1454 = vset.pattern.permute.xlu0 0
        %1455 = vperm.xlu0 %1454, %v1429
        %v1456 = vpop.permute.xlu0 %1455
        %1459 = vset.pattern.permute.xlu0 0
        %1460 = vperm.xlu0 %1459, %v1430
        %v1461 = vpop.permute.xlu0 %1460
        %1464 = vset.pattern.permute.xlu0 0
        %1465 = vperm.xlu0 %1464, %v1431
        %v1466 = vpop.permute.xlu0 %1465
        %1469 = vset.pattern.permute.xlu0 0
        %1470 = vperm.xlu0 %1469, %v1432
        %v1471 = vpop.permute.xlu0 %1470
        %1474 = vset.pattern.permute.xlu0 0
        %1475 = vperm.xlu0 %1474, %v1433
        %v1476 = vpop.permute.xlu0 %1475
        %1479 = vset.pattern.permute.xlu0 0
        %1480 = vperm.xlu0 %1479, %v1434
        %v1481 = vpop.permute.xlu0 %1480
        %1484 = vset.pattern.permute.xlu0 0
        %1485 = vperm.xlu0 %1484, %v1435
        %v1486 = vpop.permute.xlu0 %1485
        %1489 = vset.pattern.permute.xlu0 0
        %1490 = vperm.xlu0 %1489, %v1436
        %v1491 = vpop.permute.xlu0 %1490
        %1494 = vset.pattern.permute.xlu0 0
        %1495 = vperm.xlu0 %1494, %v1437
        %v1496 = vpop.permute.xlu0 %1495
        %1499 = vset.pattern.permute.xlu0 0
        %1500 = vperm.xlu0 %1499, %v1438
        %v1501 = vpop.permute.xlu0 %1500
        %1504 = vset.pattern.permute.xlu0 0
        %1505 = vperm.xlu0 %1504, %v1439
        %v1506 = vpop.permute.xlu0 %1505
        %1509 = vset.pattern.permute.xlu0 0
        %1510 = vperm.xlu0 %1509, %v1440
        %v1511 = vpop.permute.xlu0 %1510
        %1514 = vset.pattern.permute.xlu0 0
        %1515 = vperm.xlu0 %1514, %v1441
        %v1516 = vpop.permute.xlu0 %1515
        %1519 = vset.pattern.permute.xlu0 0
        %1520 = vperm.xlu0 %1519, %v1442
        %v1521 = vpop.permute.xlu0 %1520
        %v1539 = vunpack.c.l.b16 %v1395
        %v1540 = vunpack.c.l.b16 %v1396
        %v1541 = vunpack.c.l.b16 %v1397
        %v1542 = vunpack.c.l.b16 %v1398
        %v1543 = vunpack.c.l.b16 %v1399
        %v1544 = vunpack.c.l.b16 %v1400
        %v1545 = vunpack.c.l.b16 %v1401
        %v1546 = vunpack.c.l.b16 %v1402
        %v1547 = vunpack.c.l.b16 %v1403
        %v1548 = vunpack.c.l.b16 %v1404
        %v1549 = vunpack.c.l.b16 %v1405
        %v1550 = vunpack.c.l.b16 %v1406
        %v1551 = vunpack.c.l.b16 %v1407
        %v1552 = vunpack.c.l.b16 %v1408
        %v1553 = vunpack.c.l.b16 %v1409
        %v1554 = vunpack.c.l.b16 %v1410
        %v1555 = vpack.c.b16 %v1540, %v1539
        %v1556 = vpack.c.b16 %v1542, %v1541
        %v1557 = vpack.c.b16 %v1544, %v1543
        %v1558 = vpack.c.b16 %v1546, %v1545
        %v1559 = vpack.c.b16 %v1548, %v1547
        %v1560 = vpack.c.b16 %v1550, %v1549
        %v1561 = vpack.c.b16 %v1552, %v1551
        %v1562 = vpack.c.b16 %v1554, %v1553
        %1571 = vmatpush.bf16.msra.mxu0 %v1425
        %1572 = vmatpush.bf16.msra.mxu0 %v1423
        %1573 = vmatpush.bf16.msra.mxu0 %v1421
        %1574 = vmatpush.bf16.msra.mxu0 %v1419
        %1575 = vmatpush.bf16.msra.mxu0 %v1417
        %1576 = vmatpush.bf16.msra.mxu0 %v1415
        %1577 = vmatpush.bf16.msra.mxu0 %v1413
        %1578 = vmatpush.bf16.msra.mxu0 %v1411
        %1579 = vmatmul.bf16.gmra.mxu0 %v1555
        %v1580 = vpop.f32.mrf.mxu0
        %v1581 = vadd.f32 %v1446, %v1580
        %v1582 = vpop.f32.mrf.mxu0
        %v1583 = vadd.f32 %v1451, %v1582
        %1584 = vmatmul.bf16.gmra.mxu0 %v1556
        %v1585 = vpop.f32.mrf.mxu0
        %v1586 = vadd.f32 %v1456, %v1585
        %v1587 = vpop.f32.mrf.mxu0
        %v1588 = vadd.f32 %v1461, %v1587
        %1589 = vmatmul.bf16.gmra.mxu0 %v1557
        %v1590 = vpop.f32.mrf.mxu0
        %v1591 = vadd.f32 %v1466, %v1590
        %v1592 = vpop.f32.mrf.mxu0
        %v1593 = vadd.f32 %v1471, %v1592
        %1594 = vmatmul.bf16.gmra.mxu0 %v1558
        %v1595 = vpop.f32.mrf.mxu0
        %v1596 = vadd.f32 %v1476, %v1595
        %v1597 = vpop.f32.mrf.mxu0
        %v1598 = vadd.f32 %v1481, %v1597
        %1599 = vmatmul.bf16.gmra.mxu0 %v1559
        %v1600 = vpop.f32.mrf.mxu0
        %v1601 = vadd.f32 %v1486, %v1600
        %v1602 = vpop.f32.mrf.mxu0
        %v1603 = vadd.f32 %v1491, %v1602
        %1604 = vmatmul.bf16.gmra.mxu0 %v1560
        %v1605 = vpop.f32.mrf.mxu0
        %v1606 = vadd.f32 %v1496, %v1605
        %v1607 = vpop.f32.mrf.mxu0
        %v1608 = vadd.f32 %v1501, %v1607
        %1609 = vmatmul.bf16.gmra.mxu0 %v1561
        %v1610 = vpop.f32.mrf.mxu0
        %v1611 = vadd.f32 %v1506, %v1610
        %v1612 = vpop.f32.mrf.mxu0
        %v1613 = vadd.f32 %v1511, %v1612
        %1614 = vmatmul.bf16.gmra.mxu0 %v1562
        %v1615 = vpop.f32.mrf.mxu0
        %v1616 = vadd.f32 %v1516, %v1615
        %v1617 = vpop.f32.mrf.mxu0
        %v1618 = vadd.f32 %v1521, %v1617
        %1619 = vdwg.mxu0
        %1620 = vmatpush.bf16.msra.mxu0 %v1426
        %1621 = vmatpush.bf16.msra.mxu0 %v1424
        %1622 = vmatpush.bf16.msra.mxu0 %v1422
        %1623 = vmatpush.bf16.msra.mxu0 %v1420
        %1624 = vmatpush.bf16.msra.mxu0 %v1418
        %1625 = vmatpush.bf16.msra.mxu0 %v1416
        %1626 = vmatpush.bf16.msra.mxu0 %v1414
        %1627 = vmatpush.bf16.msra.mxu0 %v1412
        %1628 = vmatmul.bf16.gmra.mxu0 %v1555
        %v1629 = vpop.f32.mrf.mxu0
        %v1630 = vadd.f32 %v1446, %v1629
        %v1631 = vpop.f32.mrf.mxu0
        %v1632 = vadd.f32 %v1451, %v1631
        %1633 = vmatmul.bf16.gmra.mxu0 %v1556
        %v1634 = vpop.f32.mrf.mxu0
        %v1635 = vadd.f32 %v1456, %v1634
        %v1636 = vpop.f32.mrf.mxu0
        %v1637 = vadd.f32 %v1461, %v1636
        %1638 = vmatmul.bf16.gmra.mxu0 %v1557
        %v1639 = vpop.f32.mrf.mxu0
        %v1640 = vadd.f32 %v1466, %v1639
        %v1641 = vpop.f32.mrf.mxu0
        %v1642 = vadd.f32 %v1471, %v1641
        %1643 = vmatmul.bf16.gmra.mxu0 %v1558
        %v1644 = vpop.f32.mrf.mxu0
        %v1645 = vadd.f32 %v1476, %v1644
        %v1646 = vpop.f32.mrf.mxu0
        %v1647 = vadd.f32 %v1481, %v1646
        %1648 = vmatmul.bf16.gmra.mxu0 %v1559
        %v1649 = vpop.f32.mrf.mxu0
        %v1650 = vadd.f32 %v1486, %v1649
        %v1651 = vpop.f32.mrf.mxu0
        %v1652 = vadd.f32 %v1491, %v1651
        %1653 = vmatmul.bf16.gmra.mxu0 %v1560
        %v1654 = vpop.f32.mrf.mxu0
        %v1655 = vadd.f32 %v1496, %v1654
        %v1656 = vpop.f32.mrf.mxu0
        %v1657 = vadd.f32 %v1501, %v1656
        %1658 = vmatmul.bf16.gmra.mxu0 %v1561
        %v1659 = vpop.f32.mrf.mxu0
        %v1660 = vadd.f32 %v1506, %v1659
        %v1661 = vpop.f32.mrf.mxu0
        %v1662 = vadd.f32 %v1511, %v1661
        %1663 = vmatmul.bf16.gmra.mxu0 %v1562
        %v1664 = vpop.f32.mrf.mxu0
        %v1665 = vadd.f32 %v1516, %v1664
        %v1666 = vpop.f32.mrf.mxu0
        %v1667 = vadd.f32 %v1521, %v1666
        %1668 = vdwg.mxu0
        %v1669 = vmul.f32 %v1581, 0.15915494
        %v1670 = vmul.f32 %v1630, 0.15915494
        %v1671 = vmul.f32 %v1583, 0.15915494
        %v1672 = vmul.f32 %v1632, 0.15915494
        %v1673 = vmul.f32 %v1586, 0.15915494
        %v1674 = vmul.f32 %v1635, 0.15915494
        %v1675 = vmul.f32 %v1588, 0.15915494
        %v1676 = vmul.f32 %v1637, 0.15915494
        %v1677 = vmul.f32 %v1591, 0.15915494
        %v1678 = vmul.f32 %v1640, 0.15915494
        %v1679 = vmul.f32 %v1593, 0.15915494
        %v1680 = vmul.f32 %v1642, 0.15915494
        %v1681 = vmul.f32 %v1596, 0.15915494
        %v1682 = vmul.f32 %v1645, 0.15915494
        %v1683 = vmul.f32 %v1598, 0.15915494
        %v1684 = vmul.f32 %v1647, 0.15915494
        %v1685 = vmul.f32 %v1601, 0.15915494
        %v1686 = vmul.f32 %v1650, 0.15915494
        %v1687 = vmul.f32 %v1603, 0.15915494
        %v1688 = vmul.f32 %v1652, 0.15915494
        %v1689 = vmul.f32 %v1606, 0.15915494
        %v1690 = vmul.f32 %v1655, 0.15915494
        %v1691 = vmul.f32 %v1608, 0.15915494
        %v1692 = vmul.f32 %v1657, 0.15915494
        %v1693 = vmul.f32 %v1611, 0.15915494
        %v1694 = vmul.f32 %v1660, 0.15915494
        %v1695 = vmul.f32 %v1613, 0.15915494
        %v1696 = vmul.f32 %v1662, 0.15915494
        %v1697 = vmul.f32 %v1616, 0.15915494
        %v1698 = vmul.f32 %v1665, 0.15915494
        %v1699 = vmul.f32 %v1618, 0.15915494
        %v1700 = vmul.f32 %v1667, 0.15915494
        %v1701 = vadd.f32 %v1669, 0.5
        %v1702 = vadd.f32 %v1670, 0.5
        %v1703 = vadd.f32 %v1671, 0.5
        %v1704 = vadd.f32 %v1672, 0.5
        %v1705 = vadd.f32 %v1673, 0.5
        %v1706 = vadd.f32 %v1674, 0.5
        %v1707 = vadd.f32 %v1675, 0.5
        %v1708 = vadd.f32 %v1676, 0.5
        %v1709 = vadd.f32 %v1677, 0.5
        %v1710 = vadd.f32 %v1678, 0.5
        %v1711 = vadd.f32 %v1679, 0.5
        %v1712 = vadd.f32 %v1680, 0.5
        %v1713 = vadd.f32 %v1681, 0.5
        %v1714 = vadd.f32 %v1682, 0.5
        %v1715 = vadd.f32 %v1683, 0.5
        %v1716 = vadd.f32 %v1684, 0.5
        %v1717 = vadd.f32 %v1685, 0.5
        %v1718 = vadd.f32 %v1686, 0.5
        %v1719 = vadd.f32 %v1687, 0.5
        %v1720 = vadd.f32 %v1688, 0.5
        %v1721 = vadd.f32 %v1689, 0.5
        %v1722 = vadd.f32 %v1690, 0.5
        %v1723 = vadd.f32 %v1691, 0.5
        %v1724 = vadd.f32 %v1692, 0.5
        %v1725 = vadd.f32 %v1693, 0.5
        %v1726 = vadd.f32 %v1694, 0.5
        %v1727 = vadd.f32 %v1695, 0.5
        %v1728 = vadd.f32 %v1696, 0.5
        %v1729 = vadd.f32 %v1697, 0.5
        %v1730 = vadd.f32 %v1698, 0.5
        %v1731 = vadd.f32 %v1699, 0.5
        %v1732 = vadd.f32 %v1700, 0.5
        %v1733 = vfloor.f32 %v1701
        %v1734 = vfloor.f32 %v1702
        %v1735 = vfloor.f32 %v1703
        %v1736 = vfloor.f32 %v1704
        %v1737 = vfloor.f32 %v1705
        %v1738 = vfloor.f32 %v1706
        %v1739 = vfloor.f32 %v1707
        %v1740 = vfloor.f32 %v1708
        %v1741 = vfloor.f32 %v1709
        %v1742 = vfloor.f32 %v1710
        %v1743 = vfloor.f32 %v1711
        %v1744 = vfloor.f32 %v1712
        %v1745 = vfloor.f32 %v1713
        %v1746 = vfloor.f32 %v1714
        %v1747 = vfloor.f32 %v1715
        %v1748 = vfloor.f32 %v1716
        %v1749 = vfloor.f32 %v1717
        %v1750 = vfloor.f32 %v1718
        %v1751 = vfloor.f32 %v1719
        %v1752 = vfloor.f32 %v1720
        %v1753 = vfloor.f32 %v1721
        %v1754 = vfloor.f32 %v1722
        %v1755 = vfloor.f32 %v1723
        %v1756 = vfloor.f32 %v1724
        %v1757 = vfloor.f32 %v1725
        %v1758 = vfloor.f32 %v1726
        %v1759 = vfloor.f32 %v1727
        %v1760 = vfloor.f32 %v1728
        %v1761 = vfloor.f32 %v1729
        %v1762 = vfloor.f32 %v1730
        %v1763 = vfloor.f32 %v1731
        %v1764 = vfloor.f32 %v1732
        %v1765 = vmul.f32 %v1733, 6.2831855
        %v1766 = vmul.f32 %v1734, 6.2831855
        %v1767 = vmul.f32 %v1735, 6.2831855
        %v1768 = vmul.f32 %v1736, 6.2831855
        %v1769 = vmul.f32 %v1737, 6.2831855
        %v1770 = vmul.f32 %v1738, 6.2831855
        %v1771 = vmul.f32 %v1739, 6.2831855
        %v1772 = vmul.f32 %v1740, 6.2831855
        %v1773 = vmul.f32 %v1741, 6.2831855
        %v1774 = vmul.f32 %v1742, 6.2831855
        %v1775 = vmul.f32 %v1743, 6.2831855
        %v1776 = vmul.f32 %v1744, 6.2831855
        %v1777 = vmul.f32 %v1745, 6.2831855
        %v1778 = vmul.f32 %v1746, 6.2831855
        %v1779 = vmul.f32 %v1747, 6.2831855
        %v1780 = vmul.f32 %v1748, 6.2831855
        %v1781 = vmul.f32 %v1749, 6.2831855
        %v1782 = vmul.f32 %v1750, 6.2831855
        %v1783 = vmul.f32 %v1751, 6.2831855
        %v1784 = vmul.f32 %v1752, 6.2831855
        %v1785 = vmul.f32 %v1753, 6.2831855
        %v1786 = vmul.f32 %v1754, 6.2831855
        %v1787 = vmul.f32 %v1755, 6.2831855
        %v1788 = vmul.f32 %v1756, 6.2831855
        %v1789 = vmul.f32 %v1757, 6.2831855
        %v1790 = vmul.f32 %v1758, 6.2831855
        %v1791 = vmul.f32 %v1759, 6.2831855
        %v1792 = vmul.f32 %v1760, 6.2831855
        %v1793 = vmul.f32 %v1761, 6.2831855
        %v1794 = vmul.f32 %v1762, 6.2831855
        %v1795 = vmul.f32 %v1763, 6.2831855
        %v1796 = vmul.f32 %v1764, 6.2831855
        %v1797 = vsub.f32 %v1581, %v1765
        %v1798 = vsub.f32 %v1630, %v1766
        %v1799 = vsub.f32 %v1583, %v1767
        %v1800 = vsub.f32 %v1632, %v1768
        %v1801 = vsub.f32 %v1586, %v1769
        %v1802 = vsub.f32 %v1635, %v1770
        %v1803 = vsub.f32 %v1588, %v1771
        %v1804 = vsub.f32 %v1637, %v1772
        %v1805 = vsub.f32 %v1591, %v1773
        %v1806 = vsub.f32 %v1640, %v1774
        %v1807 = vsub.f32 %v1593, %v1775
        %v1808 = vsub.f32 %v1642, %v1776
        %v1809 = vsub.f32 %v1596, %v1777
        %v1810 = vsub.f32 %v1645, %v1778
        %v1811 = vsub.f32 %v1598, %v1779
        %v1812 = vsub.f32 %v1647, %v1780
        %v1813 = vsub.f32 %v1601, %v1781
        %v1814 = vsub.f32 %v1650, %v1782
        %v1815 = vsub.f32 %v1603, %v1783
        %v1816 = vsub.f32 %v1652, %v1784
        %v1817 = vsub.f32 %v1606, %v1785
        %v1818 = vsub.f32 %v1655, %v1786
        %v1819 = vsub.f32 %v1608, %v1787
        %v1820 = vsub.f32 %v1657, %v1788
        %v1821 = vsub.f32 %v1611, %v1789
        %v1822 = vsub.f32 %v1660, %v1790
        %v1823 = vsub.f32 %v1613, %v1791
        %v1824 = vsub.f32 %v1662, %v1792
        %v1825 = vsub.f32 %v1616, %v1793
        %v1826 = vsub.f32 %v1665, %v1794
        %v1827 = vsub.f32 %v1618, %v1795
        %v1828 = vsub.f32 %v1667, %v1796
        %v1829 = vand.u32 2147483647, %v1797
        %v1830 = vand.u32 2147483647, %v1798
        %v1831 = vand.u32 2147483647, %v1799
        %v1832 = vand.u32 2147483647, %v1800
        %v1833 = vand.u32 2147483647, %v1801
        %v1834 = vand.u32 2147483647, %v1802
        %v1835 = vand.u32 2147483647, %v1803
        %v1836 = vand.u32 2147483647, %v1804
        %v1837 = vand.u32 2147483647, %v1805
        %v1838 = vand.u32 2147483647, %v1806
        %v1839 = vand.u32 2147483647, %v1807
        %v1840 = vand.u32 2147483647, %v1808
        %v1841 = vand.u32 2147483647, %v1809
        %v1842 = vand.u32 2147483647, %v1810
        %v1843 = vand.u32 2147483647, %v1811
        %v1844 = vand.u32 2147483647, %v1812
        %v1845 = vand.u32 2147483647, %v1813
        %v1846 = vand.u32 2147483647, %v1814
        %v1847 = vand.u32 2147483647, %v1815
        %v1848 = vand.u32 2147483647, %v1816
        %v1849 = vand.u32 2147483647, %v1817
        %v1850 = vand.u32 2147483647, %v1818
        %v1851 = vand.u32 2147483647, %v1819
        %v1852 = vand.u32 2147483647, %v1820
        %v1853 = vand.u32 2147483647, %v1821
        %v1854 = vand.u32 2147483647, %v1822
        %v1855 = vand.u32 2147483647, %v1823
        %v1856 = vand.u32 2147483647, %v1824
        %v1857 = vand.u32 2147483647, %v1825
        %v1858 = vand.u32 2147483647, %v1826
        %v1859 = vand.u32 2147483647, %v1827
        %v1860 = vand.u32 2147483647, %v1828
        %vm1861 = vcmp.gt.f32.partialorder %v1829, 1.5707964
        %vm1862 = vcmp.gt.f32.partialorder %v1830, 1.5707964
        %vm1863 = vcmp.gt.f32.partialorder %v1831, 1.5707964
        %vm1864 = vcmp.gt.f32.partialorder %v1832, 1.5707964
        %vm1865 = vcmp.gt.f32.partialorder %v1833, 1.5707964
        %vm1866 = vcmp.gt.f32.partialorder %v1834, 1.5707964
        %vm1867 = vcmp.gt.f32.partialorder %v1835, 1.5707964
        %vm1868 = vcmp.gt.f32.partialorder %v1836, 1.5707964
        %vm1869 = vcmp.gt.f32.partialorder %v1837, 1.5707964
        %vm1870 = vcmp.gt.f32.partialorder %v1838, 1.5707964
        %vm1871 = vcmp.gt.f32.partialorder %v1839, 1.5707964
        %vm1872 = vcmp.gt.f32.partialorder %v1840, 1.5707964
        %vm1873 = vcmp.gt.f32.partialorder %v1841, 1.5707964
        %vm1874 = vcmp.gt.f32.partialorder %v1842, 1.5707964
        %vm1875 = vcmp.gt.f32.partialorder %v1843, 1.5707964
        %vm1876 = vcmp.gt.f32.partialorder %v1844, 1.5707964
        %vm1877 = vcmp.gt.f32.partialorder %v1845, 1.5707964
        %vm1878 = vcmp.gt.f32.partialorder %v1846, 1.5707964
        %vm1879 = vcmp.gt.f32.partialorder %v1847, 1.5707964
        %vm1880 = vcmp.gt.f32.partialorder %v1848, 1.5707964
        %vm1881 = vcmp.gt.f32.partialorder %v1849, 1.5707964
        %vm1882 = vcmp.gt.f32.partialorder %v1850, 1.5707964
        %vm1883 = vcmp.gt.f32.partialorder %v1851, 1.5707964
        %vm1884 = vcmp.gt.f32.partialorder %v1852, 1.5707964
        %vm1885 = vcmp.gt.f32.partialorder %v1853, 1.5707964
        %vm1886 = vcmp.gt.f32.partialorder %v1854, 1.5707964
        %vm1887 = vcmp.gt.f32.partialorder %v1855, 1.5707964
        %vm1888 = vcmp.gt.f32.partialorder %v1856, 1.5707964
        %vm1889 = vcmp.gt.f32.partialorder %v1857, 1.5707964
        %vm1890 = vcmp.gt.f32.partialorder %v1858, 1.5707964
        %vm1891 = vcmp.gt.f32.partialorder %v1859, 1.5707964
        %vm1892 = vcmp.gt.f32.partialorder %v1860, 1.5707964
        %vm1893 = vcmp.ge.f32.partialorder %v1797, 0.0
        %vm1894 = vcmp.ge.f32.partialorder %v1798, 0.0
        %vm1895 = vcmp.ge.f32.partialorder %v1799, 0.0
        %vm1896 = vcmp.ge.f32.partialorder %v1800, 0.0
        %vm1897 = vcmp.ge.f32.partialorder %v1801, 0.0
        %vm1898 = vcmp.ge.f32.partialorder %v1802, 0.0
        %vm1899 = vcmp.ge.f32.partialorder %v1803, 0.0
        %vm1900 = vcmp.ge.f32.partialorder %v1804, 0.0
        %vm1901 = vcmp.ge.f32.partialorder %v1805, 0.0
        %vm1902 = vcmp.ge.f32.partialorder %v1806, 0.0
        %vm1903 = vcmp.ge.f32.partialorder %v1807, 0.0
        %vm1904 = vcmp.ge.f32.partialorder %v1808, 0.0
        %vm1905 = vcmp.ge.f32.partialorder %v1809, 0.0
        %vm1906 = vcmp.ge.f32.partialorder %v1810, 0.0
        %vm1907 = vcmp.ge.f32.partialorder %v1811, 0.0
        %vm1908 = vcmp.ge.f32.partialorder %v1812, 0.0
        %vm1909 = vcmp.ge.f32.partialorder %v1813, 0.0
        %vm1910 = vcmp.ge.f32.partialorder %v1814, 0.0
        %vm1911 = vcmp.ge.f32.partialorder %v1815, 0.0
        %vm1912 = vcmp.ge.f32.partialorder %v1816, 0.0
        %vm1913 = vcmp.ge.f32.partialorder %v1817, 0.0
        %vm1914 = vcmp.ge.f32.partialorder %v1818, 0.0
        %vm1915 = vcmp.ge.f32.partialorder %v1819, 0.0
        %vm1916 = vcmp.ge.f32.partialorder %v1820, 0.0
        %vm1917 = vcmp.ge.f32.partialorder %v1821, 0.0
        %vm1918 = vcmp.ge.f32.partialorder %v1822, 0.0
        %vm1919 = vcmp.ge.f32.partialorder %v1823, 0.0
        %vm1920 = vcmp.ge.f32.partialorder %v1824, 0.0
        %vm1921 = vcmp.ge.f32.partialorder %v1825, 0.0
        %vm1922 = vcmp.ge.f32.partialorder %v1826, 0.0
        %vm1923 = vcmp.ge.f32.partialorder %v1827, 0.0
        %vm1924 = vcmp.ge.f32.partialorder %v1828, 0.0
        %v1925 = vsel %vm1893, 3.1415927, -3.1415927
        %v1926 = vsel %vm1894, 3.1415927, -3.1415927
        %v1927 = vsel %vm1895, 3.1415927, -3.1415927
        %v1928 = vsel %vm1896, 3.1415927, -3.1415927
        %v1929 = vsel %vm1897, 3.1415927, -3.1415927
        %v1930 = vsel %vm1898, 3.1415927, -3.1415927
        %v1931 = vsel %vm1899, 3.1415927, -3.1415927
        %v1932 = vsel %vm1900, 3.1415927, -3.1415927
        %v1933 = vsel %vm1901, 3.1415927, -3.1415927
        %v1934 = vsel %vm1902, 3.1415927, -3.1415927
        %v1935 = vsel %vm1903, 3.1415927, -3.1415927
        %v1936 = vsel %vm1904, 3.1415927, -3.1415927
        %v1937 = vsel %vm1905, 3.1415927, -3.1415927
        %v1938 = vsel %vm1906, 3.1415927, -3.1415927
        %v1939 = vsel %vm1907, 3.1415927, -3.1415927
        %v1940 = vsel %vm1908, 3.1415927, -3.1415927
        %v1941 = vsel %vm1909, 3.1415927, -3.1415927
        %v1942 = vsel %vm1910, 3.1415927, -3.1415927
        %v1943 = vsel %vm1911, 3.1415927, -3.1415927
        %v1944 = vsel %vm1912, 3.1415927, -3.1415927
        %v1945 = vsel %vm1913, 3.1415927, -3.1415927
        %v1946 = vsel %vm1914, 3.1415927, -3.1415927
        %v1947 = vsel %vm1915, 3.1415927, -3.1415927
        %v1948 = vsel %vm1916, 3.1415927, -3.1415927
        %v1949 = vsel %vm1917, 3.1415927, -3.1415927
        %v1950 = vsel %vm1918, 3.1415927, -3.1415927
        %v1951 = vsel %vm1919, 3.1415927, -3.1415927
        %v1952 = vsel %vm1920, 3.1415927, -3.1415927
        %v1953 = vsel %vm1921, 3.1415927, -3.1415927
        %v1954 = vsel %vm1922, 3.1415927, -3.1415927
        %v1955 = vsel %vm1923, 3.1415927, -3.1415927
        %v1956 = vsel %vm1924, 3.1415927, -3.1415927
        %v1957 = vsub.f32 %v1925, %v1797
        %v1958 = vsub.f32 %v1926, %v1798
        %v1959 = vsub.f32 %v1927, %v1799
        %v1960 = vsub.f32 %v1928, %v1800
        %v1961 = vsub.f32 %v1929, %v1801
        %v1962 = vsub.f32 %v1930, %v1802
        %v1963 = vsub.f32 %v1931, %v1803
        %v1964 = vsub.f32 %v1932, %v1804
        %v1965 = vsub.f32 %v1933, %v1805
        %v1966 = vsub.f32 %v1934, %v1806
        %v1967 = vsub.f32 %v1935, %v1807
        %v1968 = vsub.f32 %v1936, %v1808
        %v1969 = vsub.f32 %v1937, %v1809
        %v1970 = vsub.f32 %v1938, %v1810
        %v1971 = vsub.f32 %v1939, %v1811
        %v1972 = vsub.f32 %v1940, %v1812
        %v1973 = vsub.f32 %v1941, %v1813
        %v1974 = vsub.f32 %v1942, %v1814
        %v1975 = vsub.f32 %v1943, %v1815
        %v1976 = vsub.f32 %v1944, %v1816
        %v1977 = vsub.f32 %v1945, %v1817
        %v1978 = vsub.f32 %v1946, %v1818
        %v1979 = vsub.f32 %v1947, %v1819
        %v1980 = vsub.f32 %v1948, %v1820
        %v1981 = vsub.f32 %v1949, %v1821
        %v1982 = vsub.f32 %v1950, %v1822
        %v1983 = vsub.f32 %v1951, %v1823
        %v1984 = vsub.f32 %v1952, %v1824
        %v1985 = vsub.f32 %v1953, %v1825
        %v1986 = vsub.f32 %v1954, %v1826
        %v1987 = vsub.f32 %v1955, %v1827
        %v1988 = vsub.f32 %v1956, %v1828
        %v1989 = vsel %vm1861, %v1957, %v1797
        %v1990 = vsel %vm1862, %v1958, %v1798
        %v1991 = vsel %vm1863, %v1959, %v1799
        %v1992 = vsel %vm1864, %v1960, %v1800
        %v1993 = vsel %vm1865, %v1961, %v1801
        %v1994 = vsel %vm1866, %v1962, %v1802
        %v1995 = vsel %vm1867, %v1963, %v1803
        %v1996 = vsel %vm1868, %v1964, %v1804
        %v1997 = vsel %vm1869, %v1965, %v1805
        %v1998 = vsel %vm1870, %v1966, %v1806
        %v1999 = vsel %vm1871, %v1967, %v1807
        %v2000 = vsel %vm1872, %v1968, %v1808
        %v2001 = vsel %vm1873, %v1969, %v1809
        %v2002 = vsel %vm1874, %v1970, %v1810
        %v2003 = vsel %vm1875, %v1971, %v1811
        %v2004 = vsel %vm1876, %v1972, %v1812
        %v2005 = vsel %vm1877, %v1973, %v1813
        %v2006 = vsel %vm1878, %v1974, %v1814
        %v2007 = vsel %vm1879, %v1975, %v1815
        %v2008 = vsel %vm1880, %v1976, %v1816
        %v2009 = vsel %vm1881, %v1977, %v1817
        %v2010 = vsel %vm1882, %v1978, %v1818
        %v2011 = vsel %vm1883, %v1979, %v1819
        %v2012 = vsel %vm1884, %v1980, %v1820
        %v2013 = vsel %vm1885, %v1981, %v1821
        %v2014 = vsel %vm1886, %v1982, %v1822
        %v2015 = vsel %vm1887, %v1983, %v1823
        %v2016 = vsel %vm1888, %v1984, %v1824
        %v2017 = vsel %vm1889, %v1985, %v1825
        %v2018 = vsel %vm1890, %v1986, %v1826
        %v2019 = vsel %vm1891, %v1987, %v1827
        %v2020 = vsel %vm1892, %v1988, %v1828
        %v2021 = vmul.f32 %v1989, %v1989
        %v2022 = vmul.f32 %v1990, %v1990
        %v2023 = vmul.f32 %v1991, %v1991
        %v2024 = vmul.f32 %v1992, %v1992
        %v2025 = vmul.f32 %v1993, %v1993
        %v2026 = vmul.f32 %v1994, %v1994
        %v2027 = vmul.f32 %v1995, %v1995
        %v2028 = vmul.f32 %v1996, %v1996
        %v2029 = vmul.f32 %v1997, %v1997
        %v2030 = vmul.f32 %v1998, %v1998
        %v2031 = vmul.f32 %v1999, %v1999
        %v2032 = vmul.f32 %v2000, %v2000
        %v2033 = vmul.f32 %v2001, %v2001
        %v2034 = vmul.f32 %v2002, %v2002
        %v2035 = vmul.f32 %v2003, %v2003
        %v2036 = vmul.f32 %v2004, %v2004
        %v2037 = vmul.f32 %v2005, %v2005
        %v2038 = vmul.f32 %v2006, %v2006
        %v2039 = vmul.f32 %v2007, %v2007
        %v2040 = vmul.f32 %v2008, %v2008
        %v2041 = vmul.f32 %v2009, %v2009
        %v2042 = vmul.f32 %v2010, %v2010
        %v2043 = vmul.f32 %v2011, %v2011
        %v2044 = vmul.f32 %v2012, %v2012
        %v2045 = vmul.f32 %v2013, %v2013
        %v2046 = vmul.f32 %v2014, %v2014
        %v2047 = vmul.f32 %v2015, %v2015
        %v2048 = vmul.f32 %v2016, %v2016
        %v2049 = vmul.f32 %v2017, %v2017
        %v2050 = vmul.f32 %v2018, %v2018
        %v2051 = vmul.f32 %v2019, %v2019
        %v2052 = vmul.f32 %v2020, %v2020
        %v2053 = vmul.f32 %v2021, 2.7557319e-06
        %v2054 = vmul.f32 %v2022, 2.7557319e-06
        %v2055 = vmul.f32 %v2023, 2.7557319e-06
        %v2056 = vmul.f32 %v2024, 2.7557319e-06
        %v2057 = vmul.f32 %v2025, 2.7557319e-06
        %v2058 = vmul.f32 %v2026, 2.7557319e-06
        %v2059 = vmul.f32 %v2027, 2.7557319e-06
        %v2060 = vmul.f32 %v2028, 2.7557319e-06
        %v2061 = vmul.f32 %v2029, 2.7557319e-06
        %v2062 = vmul.f32 %v2030, 2.7557319e-06
        %v2063 = vmul.f32 %v2031, 2.7557319e-06
        %v2064 = vmul.f32 %v2032, 2.7557319e-06
        %v2065 = vmul.f32 %v2033, 2.7557319e-06
        %v2066 = vmul.f32 %v2034, 2.7557319e-06
        %v2067 = vmul.f32 %v2035, 2.7557319e-06
        %v2068 = vmul.f32 %v2036, 2.7557319e-06
        %v2069 = vmul.f32 %v2037, 2.7557319e-06
        %v2070 = vmul.f32 %v2038, 2.7557319e-06
        %v2071 = vmul.f32 %v2039, 2.7557319e-06
        %v2072 = vmul.f32 %v2040, 2.7557319e-06
        %v2073 = vmul.f32 %v2041, 2.7557319e-06
        %v2074 = vmul.f32 %v2042, 2.7557319e-06
        %v2075 = vmul.f32 %v2043, 2.7557319e-06
        %v2076 = vmul.f32 %v2044, 2.7557319e-06
        %v2077 = vmul.f32 %v2045, 2.7557319e-06
        %v2078 = vmul.f32 %v2046, 2.7557319e-06
        %v2079 = vmul.f32 %v2047, 2.7557319e-06
        %v2080 = vmul.f32 %v2048, 2.7557319e-06
        %v2081 = vmul.f32 %v2049, 2.7557319e-06
        %v2082 = vmul.f32 %v2050, 2.7557319e-06
        %v2083 = vmul.f32 %v2051, 2.7557319e-06
        %v2084 = vmul.f32 %v2052, 2.7557319e-06
        %v2085 = vsub.f32 %v2053, 0.0001984127
        %v2086 = vsub.f32 %v2054, 0.0001984127
        %v2087 = vsub.f32 %v2055, 0.0001984127
        %v2088 = vsub.f32 %v2056, 0.0001984127
        %v2089 = vsub.f32 %v2057, 0.0001984127
        %v2090 = vsub.f32 %v2058, 0.0001984127
        %v2091 = vsub.f32 %v2059, 0.0001984127
        %v2092 = vsub.f32 %v2060, 0.0001984127
        %v2093 = vsub.f32 %v2061, 0.0001984127
        %v2094 = vsub.f32 %v2062, 0.0001984127
        %v2095 = vsub.f32 %v2063, 0.0001984127
        %v2096 = vsub.f32 %v2064, 0.0001984127
        %v2097 = vsub.f32 %v2065, 0.0001984127
        %v2098 = vsub.f32 %v2066, 0.0001984127
        %v2099 = vsub.f32 %v2067, 0.0001984127
        %v2100 = vsub.f32 %v2068, 0.0001984127
        %v2101 = vsub.f32 %v2069, 0.0001984127
        %v2102 = vsub.f32 %v2070, 0.0001984127
        %v2103 = vsub.f32 %v2071, 0.0001984127
        %v2104 = vsub.f32 %v2072, 0.0001984127
        %v2105 = vsub.f32 %v2073, 0.0001984127
        %v2106 = vsub.f32 %v2074, 0.0001984127
        %v2107 = vsub.f32 %v2075, 0.0001984127
        %v2108 = vsub.f32 %v2076, 0.0001984127
        %v2109 = vsub.f32 %v2077, 0.0001984127
        %v2110 = vsub.f32 %v2078, 0.0001984127
        %v2111 = vsub.f32 %v2079, 0.0001984127
        %v2112 = vsub.f32 %v2080, 0.0001984127
        %v2113 = vsub.f32 %v2081, 0.0001984127
        %v2114 = vsub.f32 %v2082, 0.0001984127
        %v2115 = vsub.f32 %v2083, 0.0001984127
        %v2116 = vsub.f32 %v2084, 0.0001984127
        %v2117 = vmul.f32 %v2085, %v2021
        %v2118 = vmul.f32 %v2086, %v2022
        %v2119 = vmul.f32 %v2087, %v2023
        %v2120 = vmul.f32 %v2088, %v2024
        %v2121 = vmul.f32 %v2089, %v2025
        %v2122 = vmul.f32 %v2090, %v2026
        %v2123 = vmul.f32 %v2091, %v2027
        %v2124 = vmul.f32 %v2092, %v2028
        %v2125 = vmul.f32 %v2093, %v2029
        %v2126 = vmul.f32 %v2094, %v2030
        %v2127 = vmul.f32 %v2095, %v2031
        %v2128 = vmul.f32 %v2096, %v2032
        %v2129 = vmul.f32 %v2097, %v2033
        %v2130 = vmul.f32 %v2098, %v2034
        %v2131 = vmul.f32 %v2099, %v2035
        %v2132 = vmul.f32 %v2100, %v2036
        %v2133 = vmul.f32 %v2101, %v2037
        %v2134 = vmul.f32 %v2102, %v2038
        %v2135 = vmul.f32 %v2103, %v2039
        %v2136 = vmul.f32 %v2104, %v2040
        %v2137 = vmul.f32 %v2105, %v2041
        %v2138 = vmul.f32 %v2106, %v2042
        %v2139 = vmul.f32 %v2107, %v2043
        %v2140 = vmul.f32 %v2108, %v2044
        %v2141 = vmul.f32 %v2109, %v2045
        %v2142 = vmul.f32 %v2110, %v2046
        %v2143 = vmul.f32 %v2111, %v2047
        %v2144 = vmul.f32 %v2112, %v2048
        %v2145 = vmul.f32 %v2113, %v2049
        %v2146 = vmul.f32 %v2114, %v2050
        %v2147 = vmul.f32 %v2115, %v2051
        %v2148 = vmul.f32 %v2116, %v2052
        %v2149 = vadd.f32 %v2117, 0.008333334
        %v2150 = vadd.f32 %v2118, 0.008333334
        %v2151 = vadd.f32 %v2119, 0.008333334
        %v2152 = vadd.f32 %v2120, 0.008333334
        %v2153 = vadd.f32 %v2121, 0.008333334
        %v2154 = vadd.f32 %v2122, 0.008333334
        %v2155 = vadd.f32 %v2123, 0.008333334
        %v2156 = vadd.f32 %v2124, 0.008333334
        %v2157 = vadd.f32 %v2125, 0.008333334
        %v2158 = vadd.f32 %v2126, 0.008333334
        %v2159 = vadd.f32 %v2127, 0.008333334
        %v2160 = vadd.f32 %v2128, 0.008333334
        %v2161 = vadd.f32 %v2129, 0.008333334
        %v2162 = vadd.f32 %v2130, 0.008333334
        %v2163 = vadd.f32 %v2131, 0.008333334
        %v2164 = vadd.f32 %v2132, 0.008333334
        %v2165 = vadd.f32 %v2133, 0.008333334
        %v2166 = vadd.f32 %v2134, 0.008333334
        %v2167 = vadd.f32 %v2135, 0.008333334
        %v2168 = vadd.f32 %v2136, 0.008333334
        %v2169 = vadd.f32 %v2137, 0.008333334
        %v2170 = vadd.f32 %v2138, 0.008333334
        %v2171 = vadd.f32 %v2139, 0.008333334
        %v2172 = vadd.f32 %v2140, 0.008333334
        %v2173 = vadd.f32 %v2141, 0.008333334
        %v2174 = vadd.f32 %v2142, 0.008333334
        %v2175 = vadd.f32 %v2143, 0.008333334
        %v2176 = vadd.f32 %v2144, 0.008333334
        %v2177 = vadd.f32 %v2145, 0.008333334
        %v2178 = vadd.f32 %v2146, 0.008333334
        %v2179 = vadd.f32 %v2147, 0.008333334
        %v2180 = vadd.f32 %v2148, 0.008333334
        %v2181 = vmul.f32 %v2149, %v2021
        %v2182 = vmul.f32 %v2150, %v2022
        %v2183 = vmul.f32 %v2151, %v2023
        %v2184 = vmul.f32 %v2152, %v2024
        %v2185 = vmul.f32 %v2153, %v2025
        %v2186 = vmul.f32 %v2154, %v2026
        %v2187 = vmul.f32 %v2155, %v2027
        %v2188 = vmul.f32 %v2156, %v2028
        %v2189 = vmul.f32 %v2157, %v2029
        %v2190 = vmul.f32 %v2158, %v2030
        %v2191 = vmul.f32 %v2159, %v2031
        %v2192 = vmul.f32 %v2160, %v2032
        %v2193 = vmul.f32 %v2161, %v2033
        %v2194 = vmul.f32 %v2162, %v2034
        %v2195 = vmul.f32 %v2163, %v2035
        %v2196 = vmul.f32 %v2164, %v2036
        %v2197 = vmul.f32 %v2165, %v2037
        %v2198 = vmul.f32 %v2166, %v2038
        %v2199 = vmul.f32 %v2167, %v2039
        %v2200 = vmul.f32 %v2168, %v2040
        %v2201 = vmul.f32 %v2169, %v2041
        %v2202 = vmul.f32 %v2170, %v2042
        %v2203 = vmul.f32 %v2171, %v2043
        %v2204 = vmul.f32 %v2172, %v2044
        %v2205 = vmul.f32 %v2173, %v2045
        %v2206 = vmul.f32 %v2174, %v2046
        %v2207 = vmul.f32 %v2175, %v2047
        %v2208 = vmul.f32 %v2176, %v2048
        %v2209 = vmul.f32 %v2177, %v2049
        %v2210 = vmul.f32 %v2178, %v2050
        %v2211 = vmul.f32 %v2179, %v2051
        %v2212 = vmul.f32 %v2180, %v2052
        %v2213 = vsub.f32 %v2181, 0.16666667
        %v2214 = vsub.f32 %v2182, 0.16666667
        %v2215 = vsub.f32 %v2183, 0.16666667
        %v2216 = vsub.f32 %v2184, 0.16666667
        %v2217 = vsub.f32 %v2185, 0.16666667
        %v2218 = vsub.f32 %v2186, 0.16666667
        %v2219 = vsub.f32 %v2187, 0.16666667
        %v2220 = vsub.f32 %v2188, 0.16666667
        %v2221 = vsub.f32 %v2189, 0.16666667
        %v2222 = vsub.f32 %v2190, 0.16666667
        %v2223 = vsub.f32 %v2191, 0.16666667
        %v2224 = vsub.f32 %v2192, 0.16666667
        %v2225 = vsub.f32 %v2193, 0.16666667
        %v2226 = vsub.f32 %v2194, 0.16666667
        %v2227 = vsub.f32 %v2195, 0.16666667
        %v2228 = vsub.f32 %v2196, 0.16666667
        %v2229 = vsub.f32 %v2197, 0.16666667
        %v2230 = vsub.f32 %v2198, 0.16666667
        %v2231 = vsub.f32 %v2199, 0.16666667
        %v2232 = vsub.f32 %v2200, 0.16666667
        %v2233 = vsub.f32 %v2201, 0.16666667
        %v2234 = vsub.f32 %v2202, 0.16666667
        %v2235 = vsub.f32 %v2203, 0.16666667
        %v2236 = vsub.f32 %v2204, 0.16666667
        %v2237 = vsub.f32 %v2205, 0.16666667
        %v2238 = vsub.f32 %v2206, 0.16666667
        %v2239 = vsub.f32 %v2207, 0.16666667
        %v2240 = vsub.f32 %v2208, 0.16666667
        %v2241 = vsub.f32 %v2209, 0.16666667
        %v2242 = vsub.f32 %v2210, 0.16666667
        %v2243 = vsub.f32 %v2211, 0.16666667
        %v2244 = vsub.f32 %v2212, 0.16666667
        %v2245 = vmul.f32 %v1989, %v2021
        %v2246 = vmul.f32 %v1990, %v2022
        %v2247 = vmul.f32 %v1991, %v2023
        %v2248 = vmul.f32 %v1992, %v2024
        %v2249 = vmul.f32 %v1993, %v2025
        %v2250 = vmul.f32 %v1994, %v2026
        %v2251 = vmul.f32 %v1995, %v2027
        %v2252 = vmul.f32 %v1996, %v2028
        %v2253 = vmul.f32 %v1997, %v2029
        %v2254 = vmul.f32 %v1998, %v2030
        %v2255 = vmul.f32 %v1999, %v2031
        %v2256 = vmul.f32 %v2000, %v2032
        %v2257 = vmul.f32 %v2001, %v2033
        %v2258 = vmul.f32 %v2002, %v2034
        %v2259 = vmul.f32 %v2003, %v2035
        %v2260 = vmul.f32 %v2004, %v2036
        %v2261 = vmul.f32 %v2005, %v2037
        %v2262 = vmul.f32 %v2006, %v2038
        %v2263 = vmul.f32 %v2007, %v2039
        %v2264 = vmul.f32 %v2008, %v2040
        %v2265 = vmul.f32 %v2009, %v2041
        %v2266 = vmul.f32 %v2010, %v2042
        %v2267 = vmul.f32 %v2011, %v2043
        %v2268 = vmul.f32 %v2012, %v2044
        %v2269 = vmul.f32 %v2013, %v2045
        %v2270 = vmul.f32 %v2014, %v2046
        %v2271 = vmul.f32 %v2015, %v2047
        %v2272 = vmul.f32 %v2016, %v2048
        %v2273 = vmul.f32 %v2017, %v2049
        %v2274 = vmul.f32 %v2018, %v2050
        %v2275 = vmul.f32 %v2019, %v2051
        %v2276 = vmul.f32 %v2020, %v2052
        %v2277 = vmul.f32 %v2245, %v2213
        %v2278 = vmul.f32 %v2246, %v2214
        %v2279 = vmul.f32 %v2247, %v2215
        %v2280 = vmul.f32 %v2248, %v2216
        %v2281 = vmul.f32 %v2249, %v2217
        %v2282 = vmul.f32 %v2250, %v2218
        %v2283 = vmul.f32 %v2251, %v2219
        %v2284 = vmul.f32 %v2252, %v2220
        %v2285 = vmul.f32 %v2253, %v2221
        %v2286 = vmul.f32 %v2254, %v2222
        %v2287 = vmul.f32 %v2255, %v2223
        %v2288 = vmul.f32 %v2256, %v2224
        %v2289 = vmul.f32 %v2257, %v2225
        %v2290 = vmul.f32 %v2258, %v2226
        %v2291 = vmul.f32 %v2259, %v2227
        %v2292 = vmul.f32 %v2260, %v2228
        %v2293 = vmul.f32 %v2261, %v2229
        %v2294 = vmul.f32 %v2262, %v2230
        %v2295 = vmul.f32 %v2263, %v2231
        %v2296 = vmul.f32 %v2264, %v2232
        %v2297 = vmul.f32 %v2265, %v2233
        %v2298 = vmul.f32 %v2266, %v2234
        %v2299 = vmul.f32 %v2267, %v2235
        %v2300 = vmul.f32 %v2268, %v2236
        %v2301 = vmul.f32 %v2269, %v2237
        %v2302 = vmul.f32 %v2270, %v2238
        %v2303 = vmul.f32 %v2271, %v2239
        %v2304 = vmul.f32 %v2272, %v2240
        %v2305 = vmul.f32 %v2273, %v2241
        %v2306 = vmul.f32 %v2274, %v2242
        %v2307 = vmul.f32 %v2275, %v2243
        %v2308 = vmul.f32 %v2276, %v2244
        %v2309 = vadd.f32 %v1989, %v2277
        %v2310 = vadd.f32 %v1990, %v2278
        %v2311 = vadd.f32 %v1991, %v2279
        %v2312 = vadd.f32 %v1992, %v2280
        %v2313 = vadd.f32 %v1993, %v2281
        %v2314 = vadd.f32 %v1994, %v2282
        %v2315 = vadd.f32 %v1995, %v2283
        %v2316 = vadd.f32 %v1996, %v2284
        %v2317 = vadd.f32 %v1997, %v2285
        %v2318 = vadd.f32 %v1998, %v2286
        %v2319 = vadd.f32 %v1999, %v2287
        %v2320 = vadd.f32 %v2000, %v2288
        %v2321 = vadd.f32 %v2001, %v2289
        %v2322 = vadd.f32 %v2002, %v2290
        %v2323 = vadd.f32 %v2003, %v2291
        %v2324 = vadd.f32 %v2004, %v2292
        %v2325 = vadd.f32 %v2005, %v2293
        %v2326 = vadd.f32 %v2006, %v2294
        %v2327 = vadd.f32 %v2007, %v2295
        %v2328 = vadd.f32 %v2008, %v2296
        %v2329 = vadd.f32 %v2009, %v2297
        %v2330 = vadd.f32 %v2010, %v2298
        %v2331 = vadd.f32 %v2011, %v2299
        %v2332 = vadd.f32 %v2012, %v2300
        %v2333 = vadd.f32 %v2013, %v2301
        %v2334 = vadd.f32 %v2014, %v2302
        %v2335 = vadd.f32 %v2015, %v2303
        %v2336 = vadd.f32 %v2016, %v2304
        %v2337 = vadd.f32 %v2017, %v2305
        %v2338 = vadd.f32 %v2018, %v2306
        %v2339 = vadd.f32 %v2019, %v2307
        %v2340 = vadd.f32 %v2020, %v2308
        %v2341 = vld [vmem:[%s5] sm:$0x1]
        %v2342 = vpack.c.bf16 %v2311, %v2309
        %v2343 = vpack.c.bf16 %v2312, %v2310
        %v2344 = vpack.c.bf16 %v2315, %v2313
        %v2345 = vpack.c.bf16 %v2316, %v2314
        %v2346 = vpack.c.bf16 %v2319, %v2317
        %v2347 = vpack.c.bf16 %v2320, %v2318
        %v2348 = vpack.c.bf16 %v2323, %v2321
        %v2349 = vpack.c.bf16 %v2324, %v2322
        %v2350 = vpack.c.bf16 %v2327, %v2325
        %v2351 = vpack.c.bf16 %v2328, %v2326
        %v2352 = vpack.c.bf16 %v2331, %v2329
        %v2353 = vpack.c.bf16 %v2332, %v2330
        %v2354 = vpack.c.bf16 %v2335, %v2333
        %v2355 = vpack.c.bf16 %v2336, %v2334
        %v2356 = vpack.c.bf16 %v2339, %v2337
        %v2357 = vpack.c.bf16 %v2340, %v2338
        %s2358 = sld [smem:[#allocation2]]
        %v2359 = vstv %s2358
        %2360 = vmatpush.bf16.msra.mxu0 %v2356
        %2361 = vmatpush.bf16.msra.mxu0 %v2354
        %2362 = vmatpush.bf16.msra.mxu0 %v2352
        %2363 = vmatpush.bf16.msra.mxu0 %v2350
        %2364 = vmatpush.bf16.msra.mxu0 %v2348
        %2365 = vmatpush.bf16.msra.mxu0 %v2346
        %2366 = vmatpush.bf16.msra.mxu0 %v2344
        %2367 = vmatpush.bf16.msra.mxu0 %v2342
        %2368 = vmatmul.bf16.gmra.mxu0 %v2341
        %v2369 = vpop.f32.mrf.mxu0
        %v2370 = vadd.f32 %v2359, %v2369
        %v2371 = vpop.f32.mrf.mxu0
        %2372 = vdwg.mxu0
        %2373 = vmatpush.bf16.msra.mxu0 %v2357
        %2374 = vmatpush.bf16.msra.mxu0 %v2355
        %2375 = vmatpush.bf16.msra.mxu0 %v2353
        %2376 = vmatpush.bf16.msra.mxu0 %v2351
        %2377 = vmatpush.bf16.msra.mxu0 %v2349
        %2378 = vmatpush.bf16.msra.mxu0 %v2347
        %2379 = vmatpush.bf16.msra.mxu0 %v2345
        %2380 = vmatpush.bf16.msra.mxu0 %v2343
        %2381 = vmatmul.bf16.gmra.mxu0 %v2341
        %v2382 = vpop.f32.mrf.mxu0
        %v2383 = vadd.f32 %v2359, %v2382
        %v2384 = vpop.f32.mrf.mxu0
        %2385 = vdwg.mxu0
        %v2386 = vmax.f32 %v2370, 0.0
        %v2387 = vmax.f32 %v2383, 0.0
        %v2390 = vrot.slane %v2387, 7
        %vm2391 = vcmask 1040384
        %v2392 = vsel %vm2391, %v2386, %v2390
        %v2394 = vlaneseq
        %vm2395 = vcmp.ge.s32.totalorder %v2394, 0
        %vm2396 = vcmp.lt.s32.totalorder %v2394, 256
        %vm2397 = vmand %vm2395, %vm2396
        %2398 = vst.msk [vmem:[%s285] sm:$0x3] %vm2397, %v2392
        %s2399 = sand.u32 %s182, 1
        %s2400 = scalar_lea.sflag [#allocation4], %s2399
        %s2401 = sand.u32 %s182, 1
        %s2402 = smul.addr %s2401, 2
        %s2403 = scalar_lea.vmem [#allocation3], %s2402
        // Predicated region
        $region49: #{tpu_custom_call.1} parent=47 // pred_check
          %p2404 = pneg %p192
        $region50: #{tpu_custom_call.1} parent=47 // pred_check_branch
          %2406 = sbr.rel (%p2404) target = $region52
        $region51: #{tpu_custom_call.1} parent=47 // pred_region
          %s2407 = smul.u32 2, %s22
          %s2408 = ssub.s32 3, %s2407
          %p2409 = scmp.lt.s32.totalorder %s2408, 2
          %s2410 = scalar_select %p2409, %s2408, 2
          %s2411 = ssub.s32 2, %s2410
          %s2412 = sshll.u32 %s2411, 4
          %2413 = vsyncadd %s2400, %s2412
          %p2414 = scmp.ne.s32.totalorder 0, %s2410
          %s2415 = scalar_lea.hbm %s7, %s2407
          %s2416 = sshll.u32 %s2410, 4
          %s2417 = sshll.u32 %s2403, 4
          %s2418 = int_to_ptr.vmem [resolvable:$true] %s2417
          %s2419 = sshll.u32 %s2415, 4
          %s2420 = int_to_ptr.hbm [resolvable:$true] %s2419
          %2422 = dma.vmem_to_hbm [thread:$0]  (%p2414), %s2418, %s2416, %s2420, %s2400
        $region52: #{tpu_custom_call.1} parent=47 // pred_fallthru
          _
      $region48: #{tpu_custom_call.1} parent=5 // pred_fallthru
        _
      %p2423 = scmp.le.s32.totalorder 2, %s17
      // Predicated region
      $region53: #{tpu_custom_call.1} parent=5 // pred_check
        %p2424 = pneg %p2423
      $region54: #{tpu_custom_call.1} parent=5 // pred_check_branch
        %2426 = sbr.rel (%p2424) target = $region56
      $region55: #{tpu_custom_call.1} parent=5 // pred_region
        %s2427 = ssub.s32 %s17, 2
        // Predicated region
        $region57: #{tpu_custom_call.1} parent=55 // pred_check
          %p2428 = pneg %p198
        $region58: #{tpu_custom_call.1} parent=55 // pred_check_branch
          %2430 = sbr.rel (%p2428) target = $region60
        $region59: #{tpu_custom_call.1} parent=55 // pred_region
          %s2431 = sand.u32 %s183, 1
          %s2432 = scalar_lea.sflag [#allocation4], %s2431
          %s2433 = sand.u32 %s183, 1
          %s2434 = smul.addr %s2433, 2
          %s2435 = scalar_lea.vmem [#allocation3], %s2434
          %2437 = dma.done %s2432, 32
        $region60: #{tpu_custom_call.1} parent=55 // pred_fallthru
          _
      $region56: #{tpu_custom_call.1} parent=5 // pred_fallthru
        _
    $region6: #{tpu_custom_call.1} parent=1 // loop_footer
      %s21 = sadd.s32 1, %s17
    $region7: #{tpu_custom_call.1} parent=1 // loop_footer_branch
      %16 = sbr.rel target = $region3
    $region8: #{tpu_custom_call.1} parent=1 // loop_exit
      _
    %2438 = vsyncpa [#allocation4], 1
    %s2439 = scalar_lea.sflag [#allocation4], 1
    %2440 = vsyncpa %s2439, 1

</llo_original>
